<compile_context>
chip_gen: v7x
topology: tpu7x:2x2x1
jax: 0.10.0
libtpu: 0.0.40
codegen_flags: <defaults>
</compile_context>

<pallas_src>
import functools

import jax
import jax.numpy as jnp
from jax.experimental import pallas as pl
from jax.experimental.pallas import tpu as pltpu


# ---------------------------------------------------------------------------
# tiling helpers
# ---------------------------------------------------------------------------

def _tile(dim, cap, align):
    """Largest block <= cap that is a multiple of `align` and divides dim,
    else the full dim (full-dim blocks are always legal)."""
    if dim <= cap:
        return dim
    t = (cap // align) * align
    while t >= align:
        if dim % t == 0:
            return t
        t -= align
    return dim


def _heads_per_block(n_heads, dh, s):
    """Pack as many heads per attention grid step as comfortably fit VMEM."""
    for hb in range(n_heads, 0, -1):
        if n_heads % hb:
            continue
        scores_bytes = hb * s * s * 4            # f32 scores tile
        qkv_bytes = 3 * hb * s * dh * 2          # bf16 q/k/v tiles
        if scores_bytes + qkv_bytes <= 8 * 1024 * 1024 and hb * dh <= 1024:
            return hb
    return 1


# ---------------------------------------------------------------------------
# Pallas kernels
# ---------------------------------------------------------------------------

def _linear_kernel(x_ref, w_ref, b_ref, o_ref, acc_ref, *, activation):
    """Tiled y = x @ w + b with optional fused activation.  K is grid axis 2."""
    @pl.when(pl.program_id(2) == 0)
    def _():
        acc_ref[...] = jnp.zeros_like(acc_ref)

    acc_ref[...] += jnp.dot(x_ref[...], w_ref[...],
                            preferred_element_type=jnp.float32)

    @pl.when(pl.program_id(2) == pl.num_programs(2) - 1)
    def _():
        y = acc_ref[...] + b_ref[...]
        if activation == "gelu":
            # TODO(synk): HF BERT default act is erf-gelu; tanh-approx gelu used
            # here (EUP-friendly, numerically ~1e-3 close).
            y = 0.5 * y * (1.0 + jnp.tanh(
                0.7978845608028654 * (y + 0.044715 * y * y * y)))
        elif activation == "tanh":
            y = jnp.tanh(y)
        o_ref[...] = y.astype(o_ref.dtype)


def linear(x, w, b, activation="none", out_dtype=jnp.bfloat16):
    """y = x @ w + b, x/w in bf16 on the MXU, f32 accumulation."""
    M, K = x.shape
    N = w.shape[1]
    tm = _tile(M, 256, 8)
    tn = _tile(N, 512, 128)
    tk = _tile(K, 512, 128)
    grid = (M // tm, N // tn, K // tk)
    return pl.pallas_call(
        functools.partial(_linear_kernel, activation=activation),
        out_shape=jax.ShapeDtypeStruct((M, N), out_dtype),
        grid_spec=pltpu.PrefetchScalarGridSpec(
            num_scalar_prefetch=0,
            grid=grid,
            in_specs=[
                pl.BlockSpec((tm, tk), lambda i, j, k: (i, k)),
                pl.BlockSpec((tk, tn), lambda i, j, k: (k, j)),
                pl.BlockSpec((1, tn), lambda i, j, k: (0, j)),
            ],
            out_specs=pl.BlockSpec((tm, tn), lambda i, j, k: (i, j)),
            scratch_shapes=[pltpu.VMEM((tm, tn), jnp.float32)],
        ),
        compiler_params=pltpu.CompilerParams(
            dimension_semantics=("parallel", "parallel", "arbitrary")),
    )(x.astype(jnp.bfloat16), w.astype(jnp.bfloat16),
      b.reshape(1, N).astype(jnp.float32))


def _linear_addln_kernel(x_ref, w_ref, b_ref, r_ref, g_ref, bt_ref,
                         o_ref, acc_ref, *, eps):
    """Tiled y = LayerNorm((x @ w + b) + residual); LN needs full N per block."""
    @pl.when(pl.program_id(1) == 0)
    def _():
        acc_ref[...] = jnp.zeros_like(acc_ref)

    acc_ref[...] += jnp.dot(x_ref[...], w_ref[...],
                            preferred_element_type=jnp.float32)

    @pl.when(pl.program_id(1) == pl.num_programs(1) - 1)
    def _():
        y = acc_ref[...] + b_ref[...] + r_ref[...].astype(jnp.float32)
        mu = jnp.mean(y, axis=-1, keepdims=True)
        var = jnp.mean(jnp.square(y - mu), axis=-1, keepdims=True)
        o_ref[...] = ((y - mu) * jax.lax.rsqrt(var + eps) * g_ref[...]
                      + bt_ref[...]).astype(o_ref.dtype)


def linear_add_layernorm(x, w, b, residual, gamma, beta,
                         eps=1e-12, out_dtype=jnp.bfloat16):
    """Matmul with fused residual-add + LayerNorm epilogue (N kept whole)."""
    M, K = x.shape
    N = w.shape[1]
    tm = _tile(M, 256, 8)
    tk = _tile(K, 512, 128)
    grid = (M // tm, K // tk)
    return pl.pallas_call(
        functools.partial(_linear_addln_kernel, eps=eps),
        out_shape=jax.ShapeDtypeStruct((M, N), out_dtype),
        grid_spec=pltpu.PrefetchScalarGridSpec(
            num_scalar_prefetch=0,
            grid=grid,
            in_specs=[
                pl.BlockSpec((tm, tk), lambda i, k: (i, k)),
                pl.BlockSpec((tk, N), lambda i, k: (k, 0)),
                pl.BlockSpec((1, N), lambda i, k: (0, 0)),
                pl.BlockSpec((tm, N), lambda i, k: (i, 0)),
                pl.BlockSpec((1, N), lambda i, k: (0, 0)),
                pl.BlockSpec((1, N), lambda i, k: (0, 0)),
            ],
            out_specs=pl.BlockSpec((tm, N), lambda i, k: (i, 0)),
            scratch_shapes=[pltpu.VMEM((tm, N), jnp.float32)],
        ),
        compiler_params=pltpu.CompilerParams(
            dimension_semantics=("parallel", "arbitrary")),
    )(x.astype(jnp.bfloat16), w.astype(jnp.bfloat16),
      b.reshape(1, N).astype(jnp.float32),
      residual.astype(jnp.bfloat16),
      gamma.reshape(1, N).astype(jnp.float32),
      beta.reshape(1, N).astype(jnp.float32))


def _attn_kernel(q_ref, k_ref, v_ref, bias_ref, o_ref, *, scale):
    """Per (batch, head-block) attention: QK^T, masked softmax, P@V."""
    # Fold the 1/sqrt(Dh) scale into q: O(hb*S*Dh) work instead of O(hb*S*S).
    q = (q_ref[0].astype(jnp.float32) * scale).astype(q_ref.dtype)   # (hb,S,Dh)
    k = k_ref[0]                                                     # (hb,S,Dh)
    v = v_ref[0]                                                     # (hb,S,Dh)
    bias = bias_ref[0, 0]                                            # (1,S) f32

    s = jnp.einsum("hqd,hkd->hqk", q, k,
                   preferred_element_type=jnp.float32)               # f32 scores
    s = s + bias                                                     # mask bias
    s = s - jnp.max(s, axis=-1, keepdims=True)
    p = jnp.exp(s)
    inv = pl.reciprocal(jnp.sum(p, axis=-1, keepdims=True), approx=True)
    ctx = jnp.einsum("hqk,hkd->hqd", p.astype(v.dtype), v,
                     preferred_element_type=jnp.float32)
    o_ref[0] = (ctx * inv).astype(o_ref.dtype)


def attention(q, k, v, bias):
    """q, k, v: [B, nH, S, Dh] bf16; bias: [B, 1, 1, S] f32 additive mask."""
    # TODO(synk): for S >= 2048 convert to online-softmax (flash) form with a
    # KV grid axis so the SxS scores tile never exceeds a VMEM block.
    B, nH, S, Dh = q.shape
    scale = 1.0 / (Dh ** 0.5)
    hb = _heads_per_block(nH, Dh, S)
    qkv_spec = pl.BlockSpec((1, hb, S, Dh), lambda b, h: (b, h, 0, 0))
    return pl.pallas_call(
        functools.partial(_attn_kernel, scale=scale),
        out_shape=jax.ShapeDtypeStruct((B, nH, S, Dh), jnp.bfloat16),
        grid=(B, nH // hb),
        in_specs=[qkv_spec, qkv_spec, qkv_spec,
                  pl.BlockSpec((1, 1, 1, S), lambda b, h: (b, 0, 0, 0))],
        out_specs=pl.BlockSpec((1, hb, S, Dh), lambda b, h: (b, h, 0, 0)),
        compiler_params=pltpu.CompilerParams(
            dimension_semantics=("parallel", "parallel")),
    )(q.astype(jnp.bfloat16), k.astype(jnp.bfloat16),
      v.astype(jnp.bfloat16), bias.astype(jnp.float32))


# ---------------------------------------------------------------------------
# BERT encoder / pooler / classifier glue (plain JAX around the kernels)
# ---------------------------------------------------------------------------

def bert_layer(x, p, bias, num_heads):
    B, S, H = x.shape
    Dh = H // num_heads
    xf = x.reshape(B * S, H)

    # Fused QKV projection: one [H, 3H] matmul (x streamed once).
    qkv = linear(xf, p["wqkv"], p["bqkv"])                 # [B*S, 3H] bf16
    qkv = qkv.reshape(B, S, 3, num_heads, Dh)
    q = qkv[:, :, 0].transpose(0, 2, 1, 3)                 # [B, nH, S, Dh]
    k = qkv[:, :, 1].transpose(0, 2, 1, 3)
    v = qkv[:, :, 2].transpose(0, 2, 1, 3)

    ctx = attention(q, k, v, bias)                         # [B, nH, S, Dh]
    ctx = ctx.transpose(0, 2, 1, 3).reshape(B * S, H)

    # output projection + attention-dropout(identity) + residual + LayerNorm
    attn_out = linear_add_layernorm(ctx, p["wo"], p["bo"], xf,
                                    p["ln1_g"], p["ln1_b"])
    # FFN up-projection with fused gelu
    inter = linear(attn_out, p["wi"], p["bi"], activation="gelu")
    # FFN down-projection + dropout(identity) + residual + LayerNorm
    out = linear_add_layernorm(inter, p["wo2"], p["bo2"], attn_out,
                               p["ln2_g"], p["ln2_b"])
    return out.reshape(B, S, H)


def bert_embedding_model_wrapper(embeddings, attention_mask, params, num_heads):
    B, S, H = embeddings.shape
    # get_extended_attention_mask: (1 - mask) * large_negative, [B, 1, 1, S].
    # head_mask is None -> no-op.  Kept in f32 (scores stay f32 in-kernel).
    bias = ((1.0 - attention_mask.astype(jnp.float32)) * -1e9).reshape(B, 1, 1, S)

    x = embeddings.astype(jnp.bfloat16)
    for lp in params["layers"]:
        x = bert_layer(x, lp, bias, num_heads)

    sequence_output = x
    # pooler: tanh(dense(hidden_state[:, 0])); classifier: dense -> logits.
    # Tiny [B,H] x [H,H] / [H,num_labels] work -> plain XLA (no Pallas launch).
    cls = sequence_output[:, 0, :].astype(jnp.float32)
    pooled = jnp.tanh(
        jnp.dot(cls, params["pooler_w"], preferred_element_type=jnp.float32)
        + params["pooler_b"])
    # self.model.dropout -> identity (eval mode)
    logits = (jnp.dot(pooled, params["cls_w"],
                      preferred_element_type=jnp.float32) + params["cls_b"])
    return logits


# ---------------------------------------------------------------------------
# Deterministic parameter init (matmul weights stored bf16, LN/bias f32)
# ---------------------------------------------------------------------------

def init_params(key, hidden, num_layers, intermediate, num_labels):
    def dense(k, fan_in, fan_out, dtype=jnp.bfloat16):
        return (0.02 * jax.random.normal(k, (fan_in, fan_out),
                                         jnp.float32)).astype(dtype)

    layers = []
    for _ in range(num_layers):
        keys = jax.random.split(key, 5)
        key = keys[0]
        layers.append(dict(
            wqkv=dense(keys[1], hidden, 3 * hidden),
            bqkv=jnp.zeros((3 * hidden,), jnp.float32),
            wo=dense(keys[2], hidden, hidden),
            bo=jnp.zeros((hidden,), jnp.float32),
            ln1_g=jnp.ones((hidden,), jnp.float32),
            ln1_b=jnp.zeros((hidden,), jnp.float32),
            wi=dense(keys[3], hidden, intermediate),
            bi=jnp.zeros((intermediate,), jnp.float32),
            wo2=dense(keys[4], intermediate, hidden),
            bo2=jnp.zeros((hidden,), jnp.float32),
            ln2_g=jnp.ones((hidden,), jnp.float32),
            ln2_b=jnp.zeros((hidden,), jnp.float32),
        ))
    k1, k2 = jax.random.split(key)
    return dict(
        layers=layers,
        pooler_w=dense(k1, hidden, hidden, jnp.float32),
        pooler_b=jnp.zeros((hidden,), jnp.float32),
        cls_w=dense(k2, hidden, num_labels, jnp.float32),
        cls_b=jnp.zeros((num_labels,), jnp.float32),
    )


# ---------------------------------------------------------------------------

if __name__ == "__main__":
    B, S, H = 2, 8, 32
    NUM_HEADS = 4
    NUM_LAYERS = 2
    INTERMEDIATE = 64
    NUM_LABELS = 3

    root = jax.random.PRNGKey(0)
    k_emb, k_par = jax.random.split(root)

    embeddings = jax.random.normal(k_emb, (B, S, H), jnp.float32)
    attention_mask = jnp.ones((B, S), jnp.float32)
    attention_mask = attention_mask.at[1, 6:].set(0.0)   # pad last 2 tokens of batch 1

    params = init_params(k_par, H, NUM_LAYERS, INTERMEDIATE, NUM_LABELS)

    fwd = jax.jit(functools.partial(bert_embedding_model_wrapper,
                                    num_heads=NUM_HEADS))
    logits = fwd(embeddings, attention_mask, params)
    logits = jax.block_until_ready(logits)
    assert logits.shape == (B, NUM_LABELS)
    assert bool(jnp.all(jnp.isfinite(logits)))
    print("KERNEL_OK")
</pallas_src>

<mosaic_0001>
module attributes {stable_mosaic.version = 11 : i64} {
  func.func @_linear_kernel(%arg0: i32, %arg1: i32, %arg2: i32, %arg3: memref<16x32xbf16, #tpu.memory_space<vmem>>, %arg4: memref<32x96xbf16, #tpu.memory_space<vmem>>, %arg5: memref<1x96xf32, #tpu.memory_space<vmem>>, %arg6: memref<16x96xbf16, #tpu.memory_space<vmem>>, %arg7: memref<16x96xf32, #tpu.memory_space<vmem>>) attributes {dimension_semantics = [#tpu.dimension_semantics<parallel>, #tpu.dimension_semantics<parallel>, #tpu.dimension_semantics<arbitrary>], iteration_bounds = array<i64: 1, 1, 1>, scalar_prefetch = 0 : i64, scratch_operands = 1 : i64, tpu.core_type = #tpu.core_type<tc>, window_params = [{transform_indices = @transform_0, window_bounds = array<i64: 16, 32>}, {transform_indices = @transform_1, window_bounds = array<i64: 32, 96>}, {transform_indices = @transform_2, window_bounds = array<i64: 1, 96>}, {transform_indices = @transform_3, window_bounds = array<i64: 16, 96>}]} {
    %c0_i32 = arith.constant 0 : i32
    %0 = arith.cmpi eq, %arg2, %c0_i32 : i32
    %1 = arith.extui %0 : i1 to i32
    %c0_i32_0 = arith.constant 0 : i32
    %2 = arith.cmpi ne, %1, %c0_i32_0 : i32
    scf.if %2 {
      %cst_10 = arith.constant 0.000000e+00 : f32
      %12 = vector.broadcast %cst_10 : f32 to vector<16x96xf32>
      %c0_11 = arith.constant 0 : index
      %c0_12 = arith.constant 0 : index
      %13 = vector.load %arg7[%c0_11, %c0_12] : memref<16x96xf32, #tpu.memory_space<vmem>>, vector<16x96xf32>
      tpu.vector_store %arg7[%c0_11, %c0_12], %12 {strides = array<i32>} : memref<16x96xf32, #tpu.memory_space<vmem>>, vector<16x96xf32>,
    } else {
    }
    %c0 = arith.constant 0 : index
    %c0_1 = arith.constant 0 : index
    %3 = vector.load %arg7[%c0, %c0_1] : memref<16x96xf32, #tpu.memory_space<vmem>>, vector<16x96xf32>
    %c0_2 = arith.constant 0 : index
    %c0_3 = arith.constant 0 : index
    %4 = vector.load %arg3[%c0_2, %c0_3] : memref<16x32xbf16, #tpu.memory_space<vmem>>, vector<16x32xbf16>
    %c0_4 = arith.constant 0 : index
    %c0_5 = arith.constant 0 : index
    %5 = vector.load %arg4[%c0_4, %c0_5] : memref<32x96xbf16, #tpu.memory_space<vmem>>, vector<32x96xbf16>
    %cst = arith.constant dense<0.000000e+00> : vector<16x96xf32>
    %6 = tpu.matmul %4, %5, %cst {dimension_numbers = #tpu.dot_dimension_numbers<[1], [0], [0], [1], [0, 0, 1, 1], [], []>} : vector<16x32xbf16>, vector<32x96xbf16>, vector<16x96xf32> -> vector<16x96xf32>
    %7 = arith.addf %3, %6 : vector<16x96xf32>
    %c0_6 = arith.constant 0 : index
    %c0_7 = arith.constant 0 : index
    %8 = vector.load %arg7[%c0_6, %c0_7] : memref<16x96xf32, #tpu.memory_space<vmem>>, vector<16x96xf32>
    tpu.vector_store %arg7[%c0_6, %c0_7], %7 {strides = array<i32>} : memref<16x96xf32, #tpu.memory_space<vmem>>, vector<16x96xf32>,
    %c0_i32_8 = arith.constant 0 : i32
    %9 = arith.cmpi eq, %arg2, %c0_i32_8 : i32
    %10 = arith.extui %9 : i1 to i32
    %c0_i32_9 = arith.constant 0 : i32
    %11 = arith.cmpi ne, %10, %c0_i32_9 : i32
    scf.if %11 {
      %c0_10 = arith.constant 0 : index
      %c0_11 = arith.constant 0 : index
      %12 = vector.load %arg7[%c0_10, %c0_11] : memref<16x96xf32, #tpu.memory_space<vmem>>, vector<16x96xf32>
      %c0_12 = arith.constant 0 : index
      %c0_13 = arith.constant 0 : index
      %13 = vector.load %arg5[%c0_12, %c0_13] : memref<1x96xf32, #tpu.memory_space<vmem>>, vector<1x96xf32>
      %14 = vector.broadcast %13 : vector<1x96xf32> to vector<16x96xf32>
      %15 = arith.addf %12, %14 : vector<16x96xf32>
      %16 = arith.truncf %15 : vector<16x96xf32> to vector<16x96xbf16>
      %c0_14 = arith.constant 0 : index
      %c0_15 = arith.constant 0 : index
      %17 = vector.load %arg6[%c0_14, %c0_15] : memref<16x96xbf16, #tpu.memory_space<vmem>>, vector<16x96xbf16>
      tpu.vector_store %arg6[%c0_14, %c0_15], %16 {strides = array<i32>} : memref<16x96xbf16, #tpu.memory_space<vmem>>, vector<16x96xbf16>,
    } else {
    }
    return
  }
  func.func @transform_0(%arg0: i32, %arg1: i32, %arg2: i32) -> (i32, i32) {
    %c0_i32 = arith.constant 0 : i32
    return %arg0, %arg2 : i32, i32
  }
  func.func @transform_1(%arg0: i32, %arg1: i32, %arg2: i32) -> (i32, i32) {
    %c0_i32 = arith.constant 0 : i32
    return %arg2, %arg1 : i32, i32
  }
  func.func @transform_2(%arg0: i32, %arg1: i32, %arg2: i32) -> (i32, i32) {
    %c0_i32 = arith.constant 0 : i32
    %c0_i32_0 = arith.constant 0 : i32
    return %c0_i32, %arg1 : i32, i32
  }
  func.func @transform_3(%arg0: i32, %arg1: i32, %arg2: i32) -> (i32, i32) {
    %c0_i32 = arith.constant 0 : i32
    return %arg0, %arg1 : i32, i32
  }
}

module attributes {stable_mosaic.version = 11 : i64} {
  func.func @_attn_kernel(%arg0: i32, %arg1: i32, %arg2: memref<1x4x8x8xbf16, #tpu.memory_space<vmem>>, %arg3: memref<1x4x8x8xbf16, #tpu.memory_space<vmem>>, %arg4: memref<1x4x8x8xbf16, #tpu.memory_space<vmem>>, %arg5: memref<1x1x1x8xf32, #tpu.memory_space<vmem>>, %arg6: memref<1x4x8x8xbf16, #tpu.memory_space<vmem>>) attributes {dimension_semantics = [#tpu.dimension_semantics<parallel>, #tpu.dimension_semantics<parallel>], iteration_bounds = array<i64: 2, 1>, scalar_prefetch = 0 : i64, scratch_operands = 0 : i64, tpu.core_type = #tpu.core_type<tc>, window_params = [{transform_indices = @transform_0, window_bounds = array<i64: 1, 4, 8, 8>}, {transform_indices = @transform_1, window_bounds = array<i64: 1, 4, 8, 8>}, {transform_indices = @transform_2, window_bounds = array<i64: 1, 4, 8, 8>}, {transform_indices = @transform_3, window_bounds = array<i64: 1, 1, 1, 8>}, {transform_indices = @transform_4, window_bounds = array<i64: 1, 4, 8, 8>}]} {
    %c0 = arith.constant 0 : index
    %c0_0 = arith.constant 0 : index
    %c0_1 = arith.constant 0 : index
    %c0_2 = arith.constant 0 : index
    %0 = vector.load %arg2[%c0, %c0_0, %c0_1, %c0_2] : memref<1x4x8x8xbf16, #tpu.memory_space<vmem>>, vector<1x4x8x8xbf16>
    %1 = vector.shape_cast %0 : vector<1x4x8x8xbf16> to vector<4x8x8xbf16>
    %2 = arith.extf %1 : vector<4x8x8xbf16> to vector<4x8x8xf32>
    %cst = arith.constant 0.353553385 : f32
    %3 = vector.broadcast %cst : f32 to vector<4x8x8xf32>
    %4 = arith.mulf %2, %3 : vector<4x8x8xf32>
    %5 = arith.truncf %4 : vector<4x8x8xf32> to vector<4x8x8xbf16>
    %c0_3 = arith.constant 0 : index
    %c0_4 = arith.constant 0 : index
    %c0_5 = arith.constant 0 : index
    %c0_6 = arith.constant 0 : index
    %6 = vector.load %arg3[%c0_3, %c0_4, %c0_5, %c0_6] : memref<1x4x8x8xbf16, #tpu.memory_space<vmem>>, vector<1x4x8x8xbf16>
    %7 = vector.shape_cast %6 : vector<1x4x8x8xbf16> to vector<4x8x8xbf16>
    %c0_7 = arith.constant 0 : index
    %c0_8 = arith.constant 0 : index
    %c0_9 = arith.constant 0 : index
    %c0_10 = arith.constant 0 : index
    %8 = vector.load %arg4[%c0_7, %c0_8, %c0_9, %c0_10] : memref<1x4x8x8xbf16, #tpu.memory_space<vmem>>, vector<1x4x8x8xbf16>
    %9 = vector.shape_cast %8 : vector<1x4x8x8xbf16> to vector<4x8x8xbf16>
    %c0_11 = arith.constant 0 : index
    %c0_12 = arith.constant 0 : index
    %c0_13 = arith.constant 0 : index
    %c0_14 = arith.constant 0 : index
    %10 = vector.load %arg5[%c0_11, %c0_12, %c0_13, %c0_14] : memref<1x1x1x8xf32, #tpu.memory_space<vmem>>, vector<1x1x1x8xf32>
    %11 = vector.shape_cast %10 : vector<1x1x1x8xf32> to vector<1x8xf32>
    "tpu.trace_start"() <{level = 10 : i32, message = "hqd,hkd->hqk"}> : () -> ()
    %cst_15 = arith.constant dense<0.000000e+00> : vector<4x8x8xf32>
    %12 = tpu.matmul %5, %7, %cst_15 {dimension_numbers = #tpu.dot_dimension_numbers<[2], [2], [1], [1], [0, 0, 0, 1, 1, 1], [0], [0]>} : vector<4x8x8xbf16>, vector<4x8x8xbf16>, vector<4x8x8xf32> -> vector<4x8x8xf32>
    "tpu.trace_stop"() : () -> ()
    %13 = vector.shape_cast %11 : vector<1x8xf32> to vector<1x1x8xf32>
    %14 = vector.broadcast %13 : vector<1x1x8xf32> to vector<4x8x8xf32>
    %15 = arith.addf %12, %14 : vector<4x8x8xf32>
    %cst_16 = arith.constant dense<0xFF800000> : vector<4x8xf32>
    %16 = vector.multi_reduction <maximumf>, %15, %cst_16 [2] : vector<4x8x8xf32> to vector<4x8xf32>
    %17 = vector.shape_cast %16 : vector<4x8xf32> to vector<4x8x1xf32>
    %18 = vector.broadcast %17 : vector<4x8x1xf32> to vector<4x8x8xf32>
    %19 = arith.subf %15, %18 : vector<4x8x8xf32>
    %20 = math.exp %19 : vector<4x8x8xf32>
    %cst_17 = arith.constant dense<0.000000e+00> : vector<4x8xf32>
    %21 = vector.multi_reduction <add>, %20, %cst_17 [2] : vector<4x8x8xf32> to vector<4x8xf32>
    %22 = vector.shape_cast %21 : vector<4x8xf32> to vector<4x8x1xf32>
    %23 = tpu.reciprocal %22 {approx = true} : vector<4x8x1xf32> -> vector<4x8x1xf32>
    %24 = arith.truncf %20 : vector<4x8x8xf32> to vector<4x8x8xbf16>
    "tpu.trace_start"() <{level = 10 : i32, message = "hqk,hkd->hqd"}> : () -> ()
    %cst_18 = arith.constant dense<0.000000e+00> : vector<4x8x8xf32>
    %25 = tpu.matmul %24, %9, %cst_18 {dimension_numbers = #tpu.dot_dimension_numbers<[2], [1], [1], [2], [0, 0, 0, 1, 1, 2], [0], [0]>} : vector<4x8x8xbf16>, vector<4x8x8xbf16>, vector<4x8x8xf32> -> vector<4x8x8xf32>
    "tpu.trace_stop"() : () -> ()
    %26 = vector.broadcast %23 : vector<4x8x1xf32> to vector<4x8x8xf32>
    %27 = arith.mulf %25, %26 : vector<4x8x8xf32>
    %28 = arith.truncf %27 : vector<4x8x8xf32> to vector<4x8x8xbf16>
    %c0_19 = arith.constant 0 : index
    %c0_20 = arith.constant 0 : index
    %c0_21 = arith.constant 0 : index
    %c0_22 = arith.constant 0 : index
    %29 = vector.load %arg6[%c0_19, %c0_20, %c0_21, %c0_22] : memref<1x4x8x8xbf16, #tpu.memory_space<vmem>>, vector<1x4x8x8xbf16>
    %30 = vector.shape_cast %29 : vector<1x4x8x8xbf16> to vector<4x8x8xbf16>
    %31 = vector.shape_cast %28 : vector<4x8x8xbf16> to vector<1x4x8x8xbf16>
    tpu.vector_store %arg6[%c0_19, %c0_20, %c0_21, %c0_22], %31 {strides = array<i32>} : memref<1x4x8x8xbf16, #tpu.memory_space<vmem>>, vector<1x4x8x8xbf16>,
    return
  }
  func.func @transform_0(%arg0: i32, %arg1: i32) -> (i32, i32, i32, i32) {
    %c0_i32 = arith.constant 0 : i32
    %c0_i32_0 = arith.constant 0 : i32
    %c0_i32_1 = arith.constant 0 : i32
    return %arg0, %arg1, %c0_i32, %c0_i32_0 : i32, i32, i32, i32
  }
  func.func @transform_1(%arg0: i32, %arg1: i32) -> (i32, i32, i32, i32) {
    %c0_i32 = arith.constant 0 : i32
    %c0_i32_0 = arith.constant 0 : i32
    %c0_i32_1 = arith.constant 0 : i32
    return %arg0, %arg1, %c0_i32, %c0_i32_0 : i32, i32, i32, i32
  }
  func.func @transform_2(%arg0: i32, %arg1: i32) -> (i32, i32, i32, i32) {
    %c0_i32 = arith.constant 0 : i32
    %c0_i32_0 = arith.constant 0 : i32
    %c0_i32_1 = arith.constant 0 : i32
    return %arg0, %arg1, %c0_i32, %c0_i32_0 : i32, i32, i32, i32
  }
  func.func @transform_3(%arg0: i32, %arg1: i32) -> (i32, i32, i32, i32) {
    %c0_i32 = arith.constant 0 : i32
    %c0_i32_0 = arith.constant 0 : i32
    %c0_i32_1 = arith.constant 0 : i32
    %c0_i32_2 = arith.constant 0 : i32
    return %arg0, %c0_i32, %c0_i32_0, %c0_i32_1 : i32, i32, i32, i32
  }
  func.func @transform_4(%arg0: i32, %arg1: i32) -> (i32, i32, i32, i32) {
    %c0_i32 = arith.constant 0 : i32
    %c0_i32_0 = arith.constant 0 : i32
    %c0_i32_1 = arith.constant 0 : i32
    return %arg0, %arg1, %c0_i32, %c0_i32_0 : i32, i32, i32, i32
  }
}

module attributes {stable_mosaic.version = 11 : i64} {
  func.func @_linear_addln_kernel(%arg0: i32, %arg1: i32, %arg2: memref<16x32xbf16, #tpu.memory_space<vmem>>, %arg3: memref<32x32xbf16, #tpu.memory_space<vmem>>, %arg4: memref<1x32xf32, #tpu.memory_space<vmem>>, %arg5: memref<16x32xbf16, #tpu.memory_space<vmem>>, %arg6: memref<1x32xf32, #tpu.memory_space<vmem>>, %arg7: memref<1x32xf32, #tpu.memory_space<vmem>>, %arg8: memref<16x32xbf16, #tpu.memory_space<vmem>>, %arg9: memref<16x32xf32, #tpu.memory_space<vmem>>) attributes {dimension_semantics = [#tpu.dimension_semantics<parallel>, #tpu.dimension_semantics<arbitrary>], iteration_bounds = array<i64: 1, 1>, scalar_prefetch = 0 : i64, scratch_operands = 1 : i64, tpu.core_type = #tpu.core_type<tc>, window_params = [{transform_indices = @transform_0, window_bounds = array<i64: 16, 32>}, {transform_indices = @transform_1, window_bounds = array<i64: 32, 32>}, {pipeline_mode = #tpu.pipeline_mode<synchronous>, transform_indices = @transform_2, window_bounds = array<i64: 1, 32>}, {transform_indices = @transform_3, window_bounds = array<i64: 16, 32>}, {pipeline_mode = #tpu.pipeline_mode<synchronous>, transform_indices = @transform_4, window_bounds = array<i64: 1, 32>}, {pipeline_mode = #tpu.pipeline_mode<synchronous>, transform_indices = @transform_5, window_bounds = array<i64: 1, 32>}, {transform_indices = @transform_6, window_bounds = array<i64: 16, 32>}]} {
    %c0_i32 = arith.constant 0 : i32
    %0 = arith.cmpi eq, %arg1, %c0_i32 : i32
    %1 = arith.extui %0 : i1 to i32
    %c0_i32_0 = arith.constant 0 : i32
    %2 = arith.cmpi ne, %1, %c0_i32_0 : i32
    scf.if %2 {
      %cst_10 = arith.constant 0.000000e+00 : f32
      %12 = vector.broadcast %cst_10 : f32 to vector<16x32xf32>
      %c0_11 = arith.constant 0 : index
      %c0_12 = arith.constant 0 : index
      %13 = vector.load %arg9[%c0_11, %c0_12] : memref<16x32xf32, #tpu.memory_space<vmem>>, vector<16x32xf32>
      tpu.vector_store %arg9[%c0_11, %c0_12], %12 {strides = array<i32>} : memref<16x32xf32, #tpu.memory_space<vmem>>, vector<16x32xf32>,
    } else {
    }
    %c0 = arith.constant 0 : index
    %c0_1 = arith.constant 0 : index
    %3 = vector.load %arg9[%c0, %c0_1] : memref<16x32xf32, #tpu.memory_space<vmem>>, vector<16x32xf32>
    %c0_2 = arith.constant 0 : index
    %c0_3 = arith.constant 0 : index
    %4 = vector.load %arg2[%c0_2, %c0_3] : memref<16x32xbf16, #tpu.memory_space<vmem>>, vector<16x32xbf16>
    %c0_4 = arith.constant 0 : index
    %c0_5 = arith.constant 0 : index
    %5 = vector.load %arg3[%c0_4, %c0_5] : memref<32x32xbf16, #tpu.memory_space<vmem>>, vector<32x32xbf16>
    %cst = arith.constant dense<0.000000e+00> : vector<16x32xf32>
    %6 = tpu.matmul %4, %5, %cst {dimension_numbers = #tpu.dot_dimension_numbers<[1], [0], [0], [1], [0, 0, 1, 1], [], []>} : vector<16x32xbf16>, vector<32x32xbf16>, vector<16x32xf32> -> vector<16x32xf32>
    %7 = arith.addf %3, %6 : vector<16x32xf32>
    %c0_6 = arith.constant 0 : index
    %c0_7 = arith.constant 0 : index
    %8 = vector.load %arg9[%c0_6, %c0_7] : memref<16x32xf32, #tpu.memory_space<vmem>>, vector<16x32xf32>
    tpu.vector_store %arg9[%c0_6, %c0_7], %7 {strides = array<i32>} : memref<16x32xf32, #tpu.memory_space<vmem>>, vector<16x32xf32>,
    %c0_i32_8 = arith.constant 0 : i32
    %9 = arith.cmpi eq, %arg1, %c0_i32_8 : i32
    %10 = arith.extui %9 : i1 to i32
    %c0_i32_9 = arith.constant 0 : i32
    %11 = arith.cmpi ne, %10, %c0_i32_9 : i32
    scf.if %11 {
      %c0_10 = arith.constant 0 : index
      %c0_11 = arith.constant 0 : index
      %12 = vector.load %arg9[%c0_10, %c0_11] : memref<16x32xf32, #tpu.memory_space<vmem>>, vector<16x32xf32>
      %c0_12 = arith.constant 0 : index
      %c0_13 = arith.constant 0 : index
      %13 = vector.load %arg4[%c0_12, %c0_13] : memref<1x32xf32, #tpu.memory_space<vmem>>, vector<1x32xf32>
      %14 = vector.broadcast %13 : vector<1x32xf32> to vector<16x32xf32>
      %15 = arith.addf %12, %14 : vector<16x32xf32>
      %c0_14 = arith.constant 0 : index
      %c0_15 = arith.constant 0 : index
      %16 = vector.load %arg5[%c0_14, %c0_15] : memref<16x32xbf16, #tpu.memory_space<vmem>>, vector<16x32xbf16>
      %17 = arith.extf %16 : vector<16x32xbf16> to vector<16x32xf32>
      %18 = arith.addf %15, %17 : vector<16x32xf32>
      %cst_16 = arith.constant dense<0.000000e+00> : vector<16xf32>
      %19 = vector.multi_reduction <add>, %18, %cst_16 [1] : vector<16x32xf32> to vector<16xf32>
      %20 = vector.shape_cast %19 : vector<16xf32> to vector<16x1xf32>
      %cst_17 = arith.constant 3.200000e+01 : f32
      %21 = vector.broadcast %cst_17 : f32 to vector<16x1xf32>
      %22 = arith.divf %20, %21 : vector<16x1xf32>
      %23 = vector.broadcast %22 : vector<16x1xf32> to vector<16x32xf32>
      %24 = arith.subf %18, %23 : vector<16x32xf32>
      %25 = arith.mulf %24, %24 : vector<16x32xf32>
      %cst_18 = arith.constant dense<0.000000e+00> : vector<16xf32>
      %26 = vector.multi_reduction <add>, %25, %cst_18 [1] : vector<16x32xf32> to vector<16xf32>
      %27 = vector.shape_cast %26 : vector<16xf32> to vector<16x1xf32>
      %cst_19 = arith.constant 3.200000e+01 : f32
      %28 = vector.broadcast %cst_19 : f32 to vector<16x1xf32>
      %29 = arith.divf %27, %28 : vector<16x1xf32>
      %30 = vector.broadcast %22 : vector<16x1xf32> to vector<16x32xf32>
      %31 = arith.subf %18, %30 : vector<16x32xf32>
      %cst_20 = arith.constant 9.99999996E-13 : f32
      %32 = vector.broadcast %cst_20 : f32 to vector<16x1xf32>
      %33 = arith.addf %29, %32 : vector<16x1xf32>
      %34 = math.rsqrt %33 : vector<16x1xf32>
      %35 = vector.broadcast %34 : vector<16x1xf32> to vector<16x32xf32>
      %36 = arith.mulf %31, %35 : vector<16x32xf32>
      %c0_21 = arith.constant 0 : index
      %c0_22 = arith.constant 0 : index
      %37 = vector.load %arg6[%c0_21, %c0_22] : memref<1x32xf32, #tpu.memory_space<vmem>>, vector<1x32xf32>
      %38 = vector.broadcast %37 : vector<1x32xf32> to vector<16x32xf32>
      %39 = arith.mulf %36, %38 : vector<16x32xf32>
      %c0_23 = arith.constant 0 : index
      %c0_24 = arith.constant 0 : index
      %40 = vector.load %arg7[%c0_23, %c0_24] : memref<1x32xf32, #tpu.memory_space<vmem>>, vector<1x32xf32>
      %41 = vector.broadcast %40 : vector<1x32xf32> to vector<16x32xf32>
      %42 = arith.addf %39, %41 : vector<16x32xf32>
      %43 = arith.truncf %42 : vector<16x32xf32> to vector<16x32xbf16>
      %c0_25 = arith.constant 0 : index
      %c0_26 = arith.constant 0 : index
      %44 = vector.load %arg8[%c0_25, %c0_26] : memref<16x32xbf16, #tpu.memory_space<vmem>>, vector<16x32xbf16>
      tpu.vector_store %arg8[%c0_25, %c0_26], %43 {strides = array<i32>} : memref<16x32xbf16, #tpu.memory_space<vmem>>, vector<16x32xbf16>,
    } else {
    }
    return
  }
  func.func @transform_0(%arg0: i32, %arg1: i32) -> (i32, i32) {
    %c0_i32 = arith.constant 0 : i32
    return %arg0, %arg1 : i32, i32
  }
  func.func @transform_1(%arg0: i32, %arg1: i32) -> (i32, i32) {
    %c0_i32 = arith.constant 0 : i32
    %c0_i32_0 = arith.constant 0 : i32
    return %arg1, %c0_i32 : i32, i32
  }
  func.func @transform_2(%arg0: i32, %arg1: i32) -> (i32, i32) {
    %c0_i32 = arith.constant 0 : i32
    %c0_i32_0 = arith.constant 0 : i32
    %c0_i32_1 = arith.constant 0 : i32
    return %c0_i32, %c0_i32_0 : i32, i32
  }
  func.func @transform_3(%arg0: i32, %arg1: i32) -> (i32, i32) {
    %c0_i32 = arith.constant 0 : i32
    %c0_i32_0 = arith.constant 0 : i32
    return %arg0, %c0_i32 : i32, i32
  }
  func.func @transform_4(%arg0: i32, %arg1: i32) -> (i32, i32) {
    %c0_i32 = arith.constant 0 : i32
    %c0_i32_0 = arith.constant 0 : i32
    %c0_i32_1 = arith.constant 0 : i32
    return %c0_i32, %c0_i32_0 : i32, i32
  }
  func.func @transform_5(%arg0: i32, %arg1: i32) -> (i32, i32) {
    %c0_i32 = arith.constant 0 : i32
    %c0_i32_0 = arith.constant 0 : i32
    %c0_i32_1 = arith.constant 0 : i32
    return %c0_i32, %c0_i32_0 : i32, i32
  }
  func.func @transform_6(%arg0: i32, %arg1: i32) -> (i32, i32) {
    %c0_i32 = arith.constant 0 : i32
    %c0_i32_0 = arith.constant 0 : i32
    return %arg0, %c0_i32 : i32, i32
  }
}

module attributes {stable_mosaic.version = 11 : i64} {
  func.func @_linear_kernel(%arg0: i32, %arg1: i32, %arg2: i32, %arg3: memref<16x32xbf16, #tpu.memory_space<vmem>>, %arg4: memref<32x64xbf16, #tpu.memory_space<vmem>>, %arg5: memref<1x64xf32, #tpu.memory_space<vmem>>, %arg6: memref<16x64xbf16, #tpu.memory_space<vmem>>, %arg7: memref<16x64xf32, #tpu.memory_space<vmem>>) attributes {dimension_semantics = [#tpu.dimension_semantics<parallel>, #tpu.dimension_semantics<parallel>, #tpu.dimension_semantics<arbitrary>], iteration_bounds = array<i64: 1, 1, 1>, scalar_prefetch = 0 : i64, scratch_operands = 1 : i64, tpu.core_type = #tpu.core_type<tc>, window_params = [{transform_indices = @transform_0, window_bounds = array<i64: 16, 32>}, {transform_indices = @transform_1, window_bounds = array<i64: 32, 64>}, {transform_indices = @transform_2, window_bounds = array<i64: 1, 64>}, {transform_indices = @transform_3, window_bounds = array<i64: 16, 64>}]} {
    %c0_i32 = arith.constant 0 : i32
    %0 = arith.cmpi eq, %arg2, %c0_i32 : i32
    %1 = arith.extui %0 : i1 to i32
    %c0_i32_0 = arith.constant 0 : i32
    %2 = arith.cmpi ne, %1, %c0_i32_0 : i32
    scf.if %2 {
      %cst_10 = arith.constant 0.000000e+00 : f32
      %12 = vector.broadcast %cst_10 : f32 to vector<16x64xf32>
      %c0_11 = arith.constant 0 : index
      %c0_12 = arith.constant 0 : index
      %13 = vector.load %arg7[%c0_11, %c0_12] : memref<16x64xf32, #tpu.memory_space<vmem>>, vector<16x64xf32>
      tpu.vector_store %arg7[%c0_11, %c0_12], %12 {strides = array<i32>} : memref<16x64xf32, #tpu.memory_space<vmem>>, vector<16x64xf32>,
    } else {
    }
    %c0 = arith.constant 0 : index
    %c0_1 = arith.constant 0 : index
    %3 = vector.load %arg7[%c0, %c0_1] : memref<16x64xf32, #tpu.memory_space<vmem>>, vector<16x64xf32>
    %c0_2 = arith.constant 0 : index
    %c0_3 = arith.constant 0 : index
    %4 = vector.load %arg3[%c0_2, %c0_3] : memref<16x32xbf16, #tpu.memory_space<vmem>>, vector<16x32xbf16>
    %c0_4 = arith.constant 0 : index
    %c0_5 = arith.constant 0 : index
    %5 = vector.load %arg4[%c0_4, %c0_5] : memref<32x64xbf16, #tpu.memory_space<vmem>>, vector<32x64xbf16>
    %cst = arith.constant dense<0.000000e+00> : vector<16x64xf32>
    %6 = tpu.matmul %4, %5, %cst {dimension_numbers = #tpu.dot_dimension_numbers<[1], [0], [0], [1], [0, 0, 1, 1], [], []>} : vector<16x32xbf16>, vector<32x64xbf16>, vector<16x64xf32> -> vector<16x64xf32>
    %7 = arith.addf %3, %6 : vector<16x64xf32>
    %c0_6 = arith.constant 0 : index
    %c0_7 = arith.constant 0 : index
    %8 = vector.load %arg7[%c0_6, %c0_7] : memref<16x64xf32, #tpu.memory_space<vmem>>, vector<16x64xf32>
    tpu.vector_store %arg7[%c0_6, %c0_7], %7 {strides = array<i32>} : memref<16x64xf32, #tpu.memory_space<vmem>>, vector<16x64xf32>,
    %c0_i32_8 = arith.constant 0 : i32
    %9 = arith.cmpi eq, %arg2, %c0_i32_8 : i32
    %10 = arith.extui %9 : i1 to i32
    %c0_i32_9 = arith.constant 0 : i32
    %11 = arith.cmpi ne, %10, %c0_i32_9 : i32
    scf.if %11 {
      %c0_10 = arith.constant 0 : index
      %c0_11 = arith.constant 0 : index
      %12 = vector.load %arg7[%c0_10, %c0_11] : memref<16x64xf32, #tpu.memory_space<vmem>>, vector<16x64xf32>
      %c0_12 = arith.constant 0 : index
      %c0_13 = arith.constant 0 : index
      %13 = vector.load %arg5[%c0_12, %c0_13] : memref<1x64xf32, #tpu.memory_space<vmem>>, vector<1x64xf32>
      %14 = vector.broadcast %13 : vector<1x64xf32> to vector<16x64xf32>
      %15 = arith.addf %12, %14 : vector<16x64xf32>
      %cst_14 = arith.constant 5.000000e-01 : f32
      %16 = vector.broadcast %cst_14 : f32 to vector<16x64xf32>
      %17 = arith.mulf %16, %15 : vector<16x64xf32>
      %cst_15 = arith.constant 4.471500e-02 : f32
      %18 = vector.broadcast %cst_15 : f32 to vector<16x64xf32>
      %19 = arith.mulf %18, %15 : vector<16x64xf32>
      %20 = arith.mulf %19, %15 : vector<16x64xf32>
      %21 = arith.mulf %20, %15 : vector<16x64xf32>
      %22 = arith.addf %15, %21 : vector<16x64xf32>
      %cst_16 = arith.constant 0.797884583 : f32
      %23 = vector.broadcast %cst_16 : f32 to vector<16x64xf32>
      %24 = arith.mulf %23, %22 : vector<16x64xf32>
      %25 = math.tanh %24 : vector<16x64xf32>
      %cst_17 = arith.constant 1.000000e+00 : f32
      %26 = vector.broadcast %cst_17 : f32 to vector<16x64xf32>
      %27 = arith.addf %26, %25 : vector<16x64xf32>
      %28 = arith.mulf %17, %27 : vector<16x64xf32>
      %29 = arith.truncf %28 : vector<16x64xf32> to vector<16x64xbf16>
      %c0_18 = arith.constant 0 : index
      %c0_19 = arith.constant 0 : index
      %30 = vector.load %arg6[%c0_18, %c0_19] : memref<16x64xbf16, #tpu.memory_space<vmem>>, vector<16x64xbf16>
      tpu.vector_store %arg6[%c0_18, %c0_19], %29 {strides = array<i32>} : memref<16x64xbf16, #tpu.memory_space<vmem>>, vector<16x64xbf16>,
    } else {
    }
    return
  }
  func.func @transform_0(%arg0: i32, %arg1: i32, %arg2: i32) -> (i32, i32) {
    %c0_i32 = arith.constant 0 : i32
    return %arg0, %arg2 : i32, i32
  }
  func.func @transform_1(%arg0: i32, %arg1: i32, %arg2: i32) -> (i32, i32) {
    %c0_i32 = arith.constant 0 : i32
    return %arg2, %arg1 : i32, i32
  }
  func.func @transform_2(%arg0: i32, %arg1: i32, %arg2: i32) -> (i32, i32) {
    %c0_i32 = arith.constant 0 : i32
    %c0_i32_0 = arith.constant 0 : i32
    return %c0_i32, %arg1 : i32, i32
  }
  func.func @transform_3(%arg0: i32, %arg1: i32, %arg2: i32) -> (i32, i32) {
    %c0_i32 = arith.constant 0 : i32
    return %arg0, %arg1 : i32, i32
  }
}

module attributes {stable_mosaic.version = 11 : i64} {
  func.func @_linear_addln_kernel(%arg0: i32, %arg1: i32, %arg2: memref<16x64xbf16, #tpu.memory_space<vmem>>, %arg3: memref<64x32xbf16, #tpu.memory_space<vmem>>, %arg4: memref<1x32xf32, #tpu.memory_space<vmem>>, %arg5: memref<16x32xbf16, #tpu.memory_space<vmem>>, %arg6: memref<1x32xf32, #tpu.memory_space<vmem>>, %arg7: memref<1x32xf32, #tpu.memory_space<vmem>>, %arg8: memref<16x32xbf16, #tpu.memory_space<vmem>>, %arg9: memref<16x32xf32, #tpu.memory_space<vmem>>) attributes {dimension_semantics = [#tpu.dimension_semantics<parallel>, #tpu.dimension_semantics<arbitrary>], iteration_bounds = array<i64: 1, 1>, scalar_prefetch = 0 : i64, scratch_operands = 1 : i64, tpu.core_type = #tpu.core_type<tc>, window_params = [{transform_indices = @transform_0, window_bounds = array<i64: 16, 64>}, {transform_indices = @transform_1, window_bounds = array<i64: 64, 32>}, {pipeline_mode = #tpu.pipeline_mode<synchronous>, transform_indices = @transform_2, window_bounds = array<i64: 1, 32>}, {transform_indices = @transform_3, window_bounds = array<i64: 16, 32>}, {pipeline_mode = #tpu.pipeline_mode<synchronous>, transform_indices = @transform_4, window_bounds = array<i64: 1, 32>}, {pipeline_mode = #tpu.pipeline_mode<synchronous>, transform_indices = @transform_5, window_bounds = array<i64: 1, 32>}, {transform_indices = @transform_6, window_bounds = array<i64: 16, 32>}]} {
    %c0_i32 = arith.constant 0 : i32
    %0 = arith.cmpi eq, %arg1, %c0_i32 : i32
    %1 = arith.extui %0 : i1 to i32
    %c0_i32_0 = arith.constant 0 : i32
    %2 = arith.cmpi ne, %1, %c0_i32_0 : i32
    scf.if %2 {
      %cst_10 = arith.constant 0.000000e+00 : f32
      %12 = vector.broadcast %cst_10 : f32 to vector<16x32xf32>
      %c0_11 = arith.constant 0 : index
      %c0_12 = arith.constant 0 : index
      %13 = vector.load %arg9[%c0_11, %c0_12] : memref<16x32xf32, #tpu.memory_space<vmem>>, vector<16x32xf32>
      tpu.vector_store %arg9[%c0_11, %c0_12], %12 {strides = array<i32>} : memref<16x32xf32, #tpu.memory_space<vmem>>, vector<16x32xf32>,
    } else {
    }
    %c0 = arith.constant 0 : index
    %c0_1 = arith.constant 0 : index
    %3 = vector.load %arg9[%c0, %c0_1] : memref<16x32xf32, #tpu.memory_space<vmem>>, vector<16x32xf32>
    %c0_2 = arith.constant 0 : index
    %c0_3 = arith.constant 0 : index
    %4 = vector.load %arg2[%c0_2, %c0_3] : memref<16x64xbf16, #tpu.memory_space<vmem>>, vector<16x64xbf16>
    %c0_4 = arith.constant 0 : index
    %c0_5 = arith.constant 0 : index
    %5 = vector.load %arg3[%c0_4, %c0_5] : memref<64x32xbf16, #tpu.memory_space<vmem>>, vector<64x32xbf16>
    %cst = arith.constant dense<0.000000e+00> : vector<16x32xf32>
    %6 = tpu.matmul %4, %5, %cst {dimension_numbers = #tpu.dot_dimension_numbers<[1], [0], [0], [1], [0, 0, 1, 1], [], []>} : vector<16x64xbf16>, vector<64x32xbf16>, vector<16x32xf32> -> vector<16x32xf32>
    %7 = arith.addf %3, %6 : vector<16x32xf32>
    %c0_6 = arith.constant 0 : index
    %c0_7 = arith.constant 0 : index
    %8 = vector.load %arg9[%c0_6, %c0_7] : memref<16x32xf32, #tpu.memory_space<vmem>>, vector<16x32xf32>
    tpu.vector_store %arg9[%c0_6, %c0_7], %7 {strides = array<i32>} : memref<16x32xf32, #tpu.memory_space<vmem>>, vector<16x32xf32>,
    %c0_i32_8 = arith.constant 0 : i32
    %9 = arith.cmpi eq, %arg1, %c0_i32_8 : i32
    %10 = arith.extui %9 : i1 to i32
    %c0_i32_9 = arith.constant 0 : i32
    %11 = arith.cmpi ne, %10, %c0_i32_9 : i32
    scf.if %11 {
      %c0_10 = arith.constant 0 : index
      %c0_11 = arith.constant 0 : index
      %12 = vector.load %arg9[%c0_10, %c0_11] : memref<16x32xf32, #tpu.memory_space<vmem>>, vector<16x32xf32>
      %c0_12 = arith.constant 0 : index
      %c0_13 = arith.constant 0 : index
      %13 = vector.load %arg4[%c0_12, %c0_13] : memref<1x32xf32, #tpu.memory_space<vmem>>, vector<1x32xf32>
      %14 = vector.broadcast %13 : vector<1x32xf32> to vector<16x32xf32>
      %15 = arith.addf %12, %14 : vector<16x32xf32>
      %c0_14 = arith.constant 0 : index
      %c0_15 = arith.constant 0 : index
      %16 = vector.load %arg5[%c0_14, %c0_15] : memref<16x32xbf16, #tpu.memory_space<vmem>>, vector<16x32xbf16>
      %17 = arith.extf %16 : vector<16x32xbf16> to vector<16x32xf32>
      %18 = arith.addf %15, %17 : vector<16x32xf32>
      %cst_16 = arith.constant dense<0.000000e+00> : vector<16xf32>
      %19 = vector.multi_reduction <add>, %18, %cst_16 [1] : vector<16x32xf32> to vector<16xf32>
      %20 = vector.shape_cast %19 : vector<16xf32> to vector<16x1xf32>
      %cst_17 = arith.constant 3.200000e+01 : f32
      %21 = vector.broadcast %cst_17 : f32 to vector<16x1xf32>
      %22 = arith.divf %20, %21 : vector<16x1xf32>
      %23 = vector.broadcast %22 : vector<16x1xf32> to vector<16x32xf32>
      %24 = arith.subf %18, %23 : vector<16x32xf32>
      %25 = arith.mulf %24, %24 : vector<16x32xf32>
      %cst_18 = arith.constant dense<0.000000e+00> : vector<16xf32>
      %26 = vector.multi_reduction <add>, %25, %cst_18 [1] : vector<16x32xf32> to vector<16xf32>
      %27 = vector.shape_cast %26 : vector<16xf32> to vector<16x1xf32>
      %cst_19 = arith.constant 3.200000e+01 : f32
      %28 = vector.broadcast %cst_19 : f32 to vector<16x1xf32>
      %29 = arith.divf %27, %28 : vector<16x1xf32>
      %30 = vector.broadcast %22 : vector<16x1xf32> to vector<16x32xf32>
      %31 = arith.subf %18, %30 : vector<16x32xf32>
      %cst_20 = arith.constant 9.99999996E-13 : f32
      %32 = vector.broadcast %cst_20 : f32 to vector<16x1xf32>
      %33 = arith.addf %29, %32 : vector<16x1xf32>
      %34 = math.rsqrt %33 : vector<16x1xf32>
      %35 = vector.broadcast %34 : vector<16x1xf32> to vector<16x32xf32>
      %36 = arith.mulf %31, %35 : vector<16x32xf32>
      %c0_21 = arith.constant 0 : index
      %c0_22 = arith.constant 0 : index
      %37 = vector.load %arg6[%c0_21, %c0_22] : memref<1x32xf32, #tpu.memory_space<vmem>>, vector<1x32xf32>
      %38 = vector.broadcast %37 : vector<1x32xf32> to vector<16x32xf32>
      %39 = arith.mulf %36, %38 : vector<16x32xf32>
      %c0_23 = arith.constant 0 : index
      %c0_24 = arith.constant 0 : index
      %40 = vector.load %arg7[%c0_23, %c0_24] : memref<1x32xf32, #tpu.memory_space<vmem>>, vector<1x32xf32>
      %41 = vector.broadcast %40 : vector<1x32xf32> to vector<16x32xf32>
      %42 = arith.addf %39, %41 : vector<16x32xf32>
      %43 = arith.truncf %42 : vector<16x32xf32> to vector<16x32xbf16>
      %c0_25 = arith.constant 0 : index
      %c0_26 = arith.constant 0 : index
      %44 = vector.load %arg8[%c0_25, %c0_26] : memref<16x32xbf16, #tpu.memory_space<vmem>>, vector<16x32xbf16>
      tpu.vector_store %arg8[%c0_25, %c0_26], %43 {strides = array<i32>} : memref<16x32xbf16, #tpu.memory_space<vmem>>, vector<16x32xbf16>,
    } else {
    }
    return
  }
  func.func @transform_0(%arg0: i32, %arg1: i32) -> (i32, i32) {
    %c0_i32 = arith.constant 0 : i32
    return %arg0, %arg1 : i32, i32
  }
  func.func @transform_1(%arg0: i32, %arg1: i32) -> (i32, i32) {
    %c0_i32 = arith.constant 0 : i32
    %c0_i32_0 = arith.constant 0 : i32
    return %arg1, %c0_i32 : i32, i32
  }
  func.func @transform_2(%arg0: i32, %arg1: i32) -> (i32, i32) {
    %c0_i32 = arith.constant 0 : i32
    %c0_i32_0 = arith.constant 0 : i32
    %c0_i32_1 = arith.constant 0 : i32
    return %c0_i32, %c0_i32_0 : i32, i32
  }
  func.func @transform_3(%arg0: i32, %arg1: i32) -> (i32, i32) {
    %c0_i32 = arith.constant 0 : i32
    %c0_i32_0 = arith.constant 0 : i32
    return %arg0, %c0_i32 : i32, i32
  }
  func.func @transform_4(%arg0: i32, %arg1: i32) -> (i32, i32) {
    %c0_i32 = arith.constant 0 : i32
    %c0_i32_0 = arith.constant 0 : i32
    %c0_i32_1 = arith.constant 0 : i32
    return %c0_i32, %c0_i32_0 : i32, i32
  }
  func.func @transform_5(%arg0: i32, %arg1: i32) -> (i32, i32) {
    %c0_i32 = arith.constant 0 : i32
    %c0_i32_0 = arith.constant 0 : i32
    %c0_i32_1 = arith.constant 0 : i32
    return %c0_i32, %c0_i32_0 : i32, i32
  }
  func.func @transform_6(%arg0: i32, %arg1: i32) -> (i32, i32) {
    %c0_i32 = arith.constant 0 : i32
    %c0_i32_0 = arith.constant 0 : i32
    return %arg0, %c0_i32 : i32, i32
  }
}

</mosaic_0001>

<llo_original>
// kernel: bert_embedding_model_wrapper.10
$region0: #{bert_embedding_model_wrapper.10}
  #allocation0 [shape = 'u32[]', space=smem, size = 0x4, offset = 0x4, fixed_abs, tag = 'smem constant byte address 0x4 - core index']
  #allocation1 [shape = 'u32[144,128]{1,0:T(1,128)}', space=vmem, size = 0x12000, scoped, tag = 'internal scratch']
  #allocation2 [shape = 'f32[16,96]{1,0:T(8,128)}', space=vmem, size = 0x2000, scoped, tag = 'scratch operand']
  %s0 = inlined_call_operand.vmem [shape: bf16[16,32], index: 0, kind: input, shape index: {}]
  %s1 = inlined_call_operand.vmem [shape: bf16[32,96], index: 1, kind: input, shape index: {}]
  %s2 = inlined_call_operand.vmem [shape: f32[1,96], index: 2, kind: input, shape index: {}]
  %s3 = inlined_call_operand.vmem [shape: bf16[16,96], index: 3, kind: output, shape index: {}]
  %s4 = sld [smem:[#allocation0]]
  $region30: #{bert_embedding_model_wrapper.10} parent=0
    _
  %s6 = ssub.s32 1, %s4
  %s7 = scalar_select 0, %s6, %s4
  // Predicated region
  $region2: #{bert_embedding_model_wrapper.10} parent=0 // pred_check
    _
  $region3: #{bert_embedding_model_wrapper.10} parent=0 // pred_check_branch
    %9 = sbr.rel (0) target = $region5
  $region4: #{bert_embedding_model_wrapper.10} parent=0 // pred_region
    _
  $region5: #{bert_embedding_model_wrapper.10} parent=0 // pred_fallthru
    _
  // Predicated region
  $region6: #{bert_embedding_model_wrapper.10} parent=0 // pred_check
    _
  $region7: #{bert_embedding_model_wrapper.10} parent=0 // pred_check_branch
    %11 = sbr.rel (0) target = $region9
  $region8: #{bert_embedding_model_wrapper.10} parent=0 // pred_region
    _
  $region9: #{bert_embedding_model_wrapper.10} parent=0 // pred_fallthru
    _
  // Predicated region
  $region10: #{bert_embedding_model_wrapper.10} parent=0 // pred_check
    _
  $region11: #{bert_embedding_model_wrapper.10} parent=0 // pred_check_branch
    %13 = sbr.rel (0) target = $region13
  $region12: #{bert_embedding_model_wrapper.10} parent=0 // pred_region
    _
  $region13: #{bert_embedding_model_wrapper.10} parent=0 // pred_fallthru
    _
  %p15 = scmp.eq.s32.totalorder 0, 0
  // Predicated region
  $region14: #{bert_embedding_model_wrapper.10} parent=0 // pred_check
    %p16 = pneg %p15
  $region15: #{bert_embedding_model_wrapper.10} parent=0 // pred_check_branch
    %18 = sbr.rel (%p16) target = $region17
  $region16: #{bert_embedding_model_wrapper.10} parent=0 // pred_region
    %vm19 = vcmask 785408
    %20 = vst.msk [vmem:[#allocation2] sm:$0xff] %vm19, 0.0
    %21 = vst.msk [vmem:[#allocation2 + $0x8] sm:$0xff] %vm19, 0.0
  $region17: #{bert_embedding_model_wrapper.10} parent=0 // pred_fallthru
    _
  %v22 = vld [vmem:[#allocation2] sm:$0xff]
  %v23 = vld [vmem:[#allocation2 + $0x8] sm:$0xff]
  %v24 = vld [vmem:[%s0] sm:$0xf]
  %v25 = vld [vmem:[%s0 + $0x4] sm:$0xf]
  %v26 = vld [vmem:[%s1] sm:$0xf]
  %v27 = vld [vmem:[%s1 + $0x4] sm:$0xf]
  %v28 = vld [vmem:[%s1 + $0x8] sm:$0xf]
  %v29 = vld [vmem:[%s1 + $0xc] sm:$0xf]
  %v32 = vunpack.c.l.b16 %v24
  %v33 = vunpack.c.l.b16 %v25
  %v34 = vpack.c.b16 %v33, %v32
  %v39 = vunpack.c.l.b16 %v26
  %v40 = vunpack.c.l.b16 %v27
  %v41 = vunpack.c.l.b16 %v28
  %v42 = vunpack.c.l.b16 %v29
  %v43 = vpack.c.b16 %v40, %v39
  %v44 = vpack.c.b16 %v42, %v41
  %vm47 = vcmask 261120
  %v49 = vsel %vm47, %v34, 0
  %51 = vmatprep.subr.bf16.mxu0 0
  %52 = vmatpush1.bf16.msra.mxu0 %v43
  %53 = vmatprep.subr.bf16.mxu0 0
  %54 = vmatpush1.bf16.msra.mxu0 %v44
  %55 = vmatprep.subr.bf16.mxu0 0
  %56 = vmatpush1.bf16.msra.mxu0 0
  %57 = vmatprep.subr.bf16.mxu0 0
  %58 = vmatpush1.bf16.msra.mxu0 0
  %59 = vmatprep.subr.bf16.mxu0 0
  %60 = vmatpush1.bf16.msra.mxu0 0
  %61 = vmatprep.subr.bf16.mxu0 0
  %62 = vmatpush1.bf16.msra.mxu0 0
  %63 = vmatprep.subr.bf16.mxu0 0
  %64 = vmatpush1.bf16.msra.mxu0 0
  %65 = vmatprep.subr.bf16.mxu0 0
  %66 = vmatpush1.bf16.msra.mxu0 0
  %67 = vmatprep.subr.bf16.mxu0 0
  %68 = vmatpush1.bf16.msra.mxu0 0
  %69 = vmatprep.subr.bf16.mxu0 0
  %70 = vmatpush1.bf16.msra.mxu0 0
  %71 = vmatprep.subr.bf16.mxu0 0
  %72 = vmatpush1.bf16.msra.mxu0 0
  %73 = vmatprep.subr.bf16.mxu0 0
  %74 = vmatpush1.bf16.msra.mxu0 0
  %75 = vmatprep.subr.bf16.mxu0 0
  %76 = vmatpush1.bf16.msra.mxu0 0
  %77 = vmatprep.subr.bf16.mxu0 0
  %78 = vmatpush1.bf16.msra.mxu0 0
  %79 = vmatprep.subr.bf16.mxu0 0
  %80 = vmatpush1.bf16.msra.mxu0 0
  %81 = vmatprep.subr.bf16.mxu0 0
  %82 = vmatpush1.bf16.msra.mxu0 0
  %83 = vmatprep.mubr.bf16.mxu0 0
  %84 = vmatmul.mubr.bf16.gmra.mrb[0].mxu0 %v49
  %v85 = vpop.f32.mrb[0].mxu0
  %v86 = vadd.f32 0.0, %v85
  %v87 = vpop.f32.mrb[0].mxu0
  %v88 = vpop.f32.mrb[0].mxu0
  %v89 = vadd.f32 0.0, %v88
  %v90 = vpop.f32.mrb[0].mxu0
  %91 = vdwg.mxu0
  %v92 = vadd.f32 %v22, %v86
  %v93 = vadd.f32 %v23, %v89
  %vm94 = vcmask 785408
  %95 = vst.msk [vmem:[#allocation2] sm:$0xff] %vm94, %v92
  %96 = vst.msk [vmem:[#allocation2 + $0x8] sm:$0xff] %vm94, %v93
  // Predicated region
  $region18: #{bert_embedding_model_wrapper.10} parent=0 // pred_check
    %p97 = pneg %p15
  $region19: #{bert_embedding_model_wrapper.10} parent=0 // pred_check_branch
    %99 = sbr.rel (%p97) target = $region21
  $region20: #{bert_embedding_model_wrapper.10} parent=0 // pred_region
    %v100 = vld [vmem:[#allocation2] sm:$0xff]
    %v101 = vld [vmem:[#allocation2 + $0x8] sm:$0xff]
    %v102 = vld [vmem:[%s2] sm:$0x1]
    %v104 = vlaneseq
    %v105 = vshrl.u32 %v104, 7
    %v106 = vsub.s32 0, %v105
    %v107 = vrot.slane %v102, %v106
    %v109 = vadd.f32 %v100, %v107
    %v110 = vadd.f32 %v101, %v107
    %v111 = vpack.c.bf16 %v110, %v109
    %v113 = vunpack.c.l.b16 %v111
    %v114 = vunpack.c.h.b16 %v111
    %v115 = vpack.c.b16 %v113, %v113
    %v116 = vpack.c.b16 %v114, %v114
    %vm119 = vcmask 781312
    %120 = vst.msk [vmem:[%s3] sm:$0xf] %vm119, %v115
    %121 = vst.msk [vmem:[%s3 + $0x4] sm:$0xf] %vm119, %v116
  $region21: #{bert_embedding_model_wrapper.10} parent=0 // pred_fallthru
    _
  // Predicated region
  $region22: #{bert_embedding_model_wrapper.10} parent=0 // pred_check
    _
  $region23: #{bert_embedding_model_wrapper.10} parent=0 // pred_check_branch
    %123 = sbr.rel (0) target = $region25
  $region24: #{bert_embedding_model_wrapper.10} parent=0 // pred_region
    _
  $region25: #{bert_embedding_model_wrapper.10} parent=0 // pred_fallthru
    _
  // Predicated region
  $region26: #{bert_embedding_model_wrapper.10} parent=0 // pred_check
    _
  $region27: #{bert_embedding_model_wrapper.10} parent=0 // pred_check_branch
    %125 = sbr.rel (0) target = $region29
  $region28: #{bert_embedding_model_wrapper.10} parent=0 // pred_region
    _
  $region29: #{bert_embedding_model_wrapper.10} parent=0 // pred_fallthru
    _

// kernel: bert_embedding_model_wrapper.13
$region0: #{bert_embedding_model_wrapper.13}
  #allocation0 [shape = 'u32[]', space=smem, size = 0x4, offset = 0x4, fixed_abs, tag = 'smem constant byte address 0x4 - core index']
  #allocation1 [shape = 'u32[144,128]{1,0:T(1,128)}', space=vmem, size = 0x12000, scoped, tag = 'internal scratch']
  #allocation2 [shape = 'f32[16,64]{1,0:T(8,128)}', space=vmem, size = 0x2000, scoped, tag = 'scratch operand']
  %s0 = inlined_call_operand.vmem [shape: bf16[16,32], index: 0, kind: input, shape index: {}]
  %s1 = inlined_call_operand.vmem [shape: bf16[32,64], index: 1, kind: input, shape index: {}]
  %s2 = inlined_call_operand.vmem [shape: f32[1,64], index: 2, kind: input, shape index: {}]
  %s3 = inlined_call_operand.vmem [shape: bf16[16,64], index: 3, kind: output, shape index: {}]
  %s4 = sld [smem:[#allocation0]]
  $region30: #{bert_embedding_model_wrapper.13} parent=0
    _
  %s6 = ssub.s32 1, %s4
  %s7 = scalar_select 0, %s6, %s4
  // Predicated region
  $region2: #{bert_embedding_model_wrapper.13} parent=0 // pred_check
    _
  $region3: #{bert_embedding_model_wrapper.13} parent=0 // pred_check_branch
    %9 = sbr.rel (0) target = $region5
  $region4: #{bert_embedding_model_wrapper.13} parent=0 // pred_region
    _
  $region5: #{bert_embedding_model_wrapper.13} parent=0 // pred_fallthru
    _
  // Predicated region
  $region6: #{bert_embedding_model_wrapper.13} parent=0 // pred_check
    _
  $region7: #{bert_embedding_model_wrapper.13} parent=0 // pred_check_branch
    %11 = sbr.rel (0) target = $region9
  $region8: #{bert_embedding_model_wrapper.13} parent=0 // pred_region
    _
  $region9: #{bert_embedding_model_wrapper.13} parent=0 // pred_fallthru
    _
  // Predicated region
  $region10: #{bert_embedding_model_wrapper.13} parent=0 // pred_check
    _
  $region11: #{bert_embedding_model_wrapper.13} parent=0 // pred_check_branch
    %13 = sbr.rel (0) target = $region13
  $region12: #{bert_embedding_model_wrapper.13} parent=0 // pred_region
    _
  $region13: #{bert_embedding_model_wrapper.13} parent=0 // pred_fallthru
    _
  %p15 = scmp.eq.s32.totalorder 0, 0
  // Predicated region
  $region14: #{bert_embedding_model_wrapper.13} parent=0 // pred_check
    %p16 = pneg %p15
  $region15: #{bert_embedding_model_wrapper.13} parent=0 // pred_check_branch
    %18 = sbr.rel (%p16) target = $region17
  $region16: #{bert_embedding_model_wrapper.13} parent=0 // pred_region
    %vm19 = vcmask 523264
    %20 = vst.msk [vmem:[#allocation2] sm:$0xff] %vm19, 0.0
    %21 = vst.msk [vmem:[#allocation2 + $0x8] sm:$0xff] %vm19, 0.0
  $region17: #{bert_embedding_model_wrapper.13} parent=0 // pred_fallthru
    _
  %v22 = vld [vmem:[#allocation2] sm:$0xff]
  %v23 = vld [vmem:[#allocation2 + $0x8] sm:$0xff]
  %v24 = vld [vmem:[%s0] sm:$0xf]
  %v25 = vld [vmem:[%s0 + $0x4] sm:$0xf]
  %v26 = vld [vmem:[%s1] sm:$0xf]
  %v27 = vld [vmem:[%s1 + $0x4] sm:$0xf]
  %v28 = vld [vmem:[%s1 + $0x8] sm:$0xf]
  %v29 = vld [vmem:[%s1 + $0xc] sm:$0xf]
  %v32 = vunpack.c.l.b16 %v24
  %v33 = vunpack.c.l.b16 %v25
  %v34 = vpack.c.b16 %v33, %v32
  %v39 = vunpack.c.l.b16 %v26
  %v40 = vunpack.c.l.b16 %v27
  %v41 = vunpack.c.l.b16 %v28
  %v42 = vunpack.c.l.b16 %v29
  %v43 = vpack.c.b16 %v40, %v39
  %v44 = vpack.c.b16 %v42, %v41
  %vm47 = vcmask 261120
  %v49 = vsel %vm47, %v34, 0
  %51 = vmatprep.subr.bf16.mxu0 0
  %52 = vmatpush1.bf16.msra.mxu0 %v43
  %53 = vmatprep.subr.bf16.mxu0 0
  %54 = vmatpush1.bf16.msra.mxu0 %v44
  %55 = vmatprep.subr.bf16.mxu0 0
  %56 = vmatpush1.bf16.msra.mxu0 0
  %57 = vmatprep.subr.bf16.mxu0 0
  %58 = vmatpush1.bf16.msra.mxu0 0
  %59 = vmatprep.subr.bf16.mxu0 0
  %60 = vmatpush1.bf16.msra.mxu0 0
  %61 = vmatprep.subr.bf16.mxu0 0
  %62 = vmatpush1.bf16.msra.mxu0 0
  %63 = vmatprep.subr.bf16.mxu0 0
  %64 = vmatpush1.bf16.msra.mxu0 0
  %65 = vmatprep.subr.bf16.mxu0 0
  %66 = vmatpush1.bf16.msra.mxu0 0
  %67 = vmatprep.subr.bf16.mxu0 0
  %68 = vmatpush1.bf16.msra.mxu0 0
  %69 = vmatprep.subr.bf16.mxu0 0
  %70 = vmatpush1.bf16.msra.mxu0 0
  %71 = vmatprep.subr.bf16.mxu0 0
  %72 = vmatpush1.bf16.msra.mxu0 0
  %73 = vmatprep.subr.bf16.mxu0 0
  %74 = vmatpush1.bf16.msra.mxu0 0
  %75 = vmatprep.subr.bf16.mxu0 0
  %76 = vmatpush1.bf16.msra.mxu0 0
  %77 = vmatprep.subr.bf16.mxu0 0
  %78 = vmatpush1.bf16.msra.mxu0 0
  %79 = vmatprep.subr.bf16.mxu0 0
  %80 = vmatpush1.bf16.msra.mxu0 0
  %81 = vmatprep.subr.bf16.mxu0 0
  %82 = vmatpush1.bf16.msra.mxu0 0
  %83 = vmatprep.mubr.bf16.mxu0 0
  %84 = vmatmul.mubr.bf16.gmra.mrb[0].mxu0 %v49
  %v85 = vpop.f32.mrb[0].mxu0
  %v86 = vadd.f32 0.0, %v85
  %v87 = vpop.f32.mrb[0].mxu0
  %v88 = vpop.f32.mrb[0].mxu0
  %v89 = vadd.f32 0.0, %v88
  %v90 = vpop.f32.mrb[0].mxu0
  %91 = vdwg.mxu0
  %v92 = vadd.f32 %v22, %v86
  %v93 = vadd.f32 %v23, %v89
  %vm94 = vcmask 523264
  %95 = vst.msk [vmem:[#allocation2] sm:$0xff] %vm94, %v92
  %96 = vst.msk [vmem:[#allocation2 + $0x8] sm:$0xff] %vm94, %v93
  // Predicated region
  $region18: #{bert_embedding_model_wrapper.13} parent=0 // pred_check
    %p97 = pneg %p15
  $region19: #{bert_embedding_model_wrapper.13} parent=0 // pred_check_branch
    %99 = sbr.rel (%p97) target = $region21
  $region20: #{bert_embedding_model_wrapper.13} parent=0 // pred_region
    %v100 = vld [vmem:[#allocation2] sm:$0xff]
    %v101 = vld [vmem:[#allocation2 + $0x8] sm:$0xff]
    %v102 = vld [vmem:[%s2] sm:$0x1]
    %v104 = vlaneseq
    %v105 = vshrl.u32 %v104, 7
    %v106 = vsub.s32 0, %v105
    %v107 = vrot.slane %v102, %v106
    %v109 = vadd.f32 %v100, %v107
    %v110 = vadd.f32 %v101, %v107
    %v111 = vmul.f32 %v109, 0.5
    %v112 = vmul.f32 %v110, 0.5
    %v113 = vmul.f32 %v109, 0.044715
    %v114 = vmul.f32 %v110, 0.044715
    %v115 = vmul.f32 %v113, %v109
    %v116 = vmul.f32 %v114, %v110
    %v117 = vmul.f32 %v115, %v109
    %v118 = vmul.f32 %v116, %v110
    %v119 = vadd.f32 %v109, %v117
    %v120 = vadd.f32 %v110, %v118
    %v121 = vmul.f32 %v119, 0.7978846
    %v122 = vmul.f32 %v120, 0.7978846
    %v123 = vtanh.pop %v121
    %v124 = vtanh.pop %v122
    %v125 = vadd.f32 %v123, 1.0
    %v126 = vadd.f32 %v124, 1.0
    %v127 = vmul.f32 %v111, %v125
    %v128 = vmul.f32 %v112, %v126
    %v129 = vpack.c.bf16 %v128, %v127
    %v131 = vunpack.c.l.b16 %v129
    %v132 = vunpack.c.h.b16 %v129
    %v133 = vpack.c.b16 %v131, %v131
    %v134 = vpack.c.b16 %v132, %v132
    %vm137 = vcmask 519168
    %138 = vst.msk [vmem:[%s3] sm:$0xf] %vm137, %v133
    %139 = vst.msk [vmem:[%s3 + $0x4] sm:$0xf] %vm137, %v134
  $region21: #{bert_embedding_model_wrapper.13} parent=0 // pred_fallthru
    _
  // Predicated region
  $region22: #{bert_embedding_model_wrapper.13} parent=0 // pred_check
    _
  $region23: #{bert_embedding_model_wrapper.13} parent=0 // pred_check_branch
    %141 = sbr.rel (0) target = $region25
  $region24: #{bert_embedding_model_wrapper.13} parent=0 // pred_region
    _
  $region25: #{bert_embedding_model_wrapper.13} parent=0 // pred_fallthru
    _
  // Predicated region
  $region26: #{bert_embedding_model_wrapper.13} parent=0 // pred_check
    _
  $region27: #{bert_embedding_model_wrapper.13} parent=0 // pred_check_branch
    %143 = sbr.rel (0) target = $region29
  $region28: #{bert_embedding_model_wrapper.13} parent=0 // pred_region
    _
  $region29: #{bert_embedding_model_wrapper.13} parent=0 // pred_fallthru
    _

// kernel: bert_embedding_model_wrapper.12
$region0: #{bert_embedding_model_wrapper.12}
  #allocation0 [shape = 'u32[]', space=smem, size = 0x4, offset = 0x4, fixed_abs, tag = 'smem constant byte address 0x4 - core index']
  #allocation1 [shape = 'u32[144,128]{1,0:T(1,128)}', space=vmem, size = 0x12000, scoped, tag = 'internal scratch']
  #allocation2 [shape = 'f32[16,32]{1,0:T(8,128)}', space=vmem, size = 0x2000, scoped, tag = 'scratch operand']
  %s0 = inlined_call_operand.vmem [shape: bf16[16,32], index: 0, kind: input, shape index: {}]
  %s1 = inlined_call_operand.vmem [shape: bf16[32,32], index: 1, kind: input, shape index: {}]
  %s2 = inlined_call_operand.vmem [shape: f32[1,32], index: 2, kind: input, shape index: {}]
  %s3 = inlined_call_operand.vmem [shape: bf16[16,32], index: 3, kind: input, shape index: {}]
  %s4 = inlined_call_operand.vmem [shape: f32[1,32], index: 4, kind: input, shape index: {}]
  %s5 = inlined_call_operand.vmem [shape: f32[1,32], index: 5, kind: input, shape index: {}]
  %s6 = inlined_call_operand.vmem [shape: bf16[16,32], index: 6, kind: output, shape index: {}]
  %s7 = sld [smem:[#allocation0]]
  $region42: #{bert_embedding_model_wrapper.12} parent=0
    _
  %s9 = ssub.s32 1, %s7
  %s10 = scalar_select 0, %s9, %s7
  // Predicated region
  $region2: #{bert_embedding_model_wrapper.12} parent=0 // pred_check
    _
  $region3: #{bert_embedding_model_wrapper.12} parent=0 // pred_check_branch
    %12 = sbr.rel (0) target = $region5
  $region4: #{bert_embedding_model_wrapper.12} parent=0 // pred_region
    _
  $region5: #{bert_embedding_model_wrapper.12} parent=0 // pred_fallthru
    _
  // Predicated region
  $region6: #{bert_embedding_model_wrapper.12} parent=0 // pred_check
    _
  $region7: #{bert_embedding_model_wrapper.12} parent=0 // pred_check_branch
    %14 = sbr.rel (0) target = $region9
  $region8: #{bert_embedding_model_wrapper.12} parent=0 // pred_region
    _
  $region9: #{bert_embedding_model_wrapper.12} parent=0 // pred_fallthru
    _
  // Predicated region
  $region10: #{bert_embedding_model_wrapper.12} parent=0 // pred_check
    _
  $region11: #{bert_embedding_model_wrapper.12} parent=0 // pred_check_branch
    %16 = sbr.rel (0) target = $region13
  $region12: #{bert_embedding_model_wrapper.12} parent=0 // pred_region
    _
  $region13: #{bert_embedding_model_wrapper.12} parent=0 // pred_fallthru
    _
  // Predicated region
  $region14: #{bert_embedding_model_wrapper.12} parent=0 // pred_check
    _
  $region15: #{bert_embedding_model_wrapper.12} parent=0 // pred_check_branch
    %18 = sbr.rel (0) target = $region17
  $region16: #{bert_embedding_model_wrapper.12} parent=0 // pred_region
    _
  $region17: #{bert_embedding_model_wrapper.12} parent=0 // pred_fallthru
    _
  // Predicated region
  $region18: #{bert_embedding_model_wrapper.12} parent=0 // pred_check
    _
  $region19: #{bert_embedding_model_wrapper.12} parent=0 // pred_check_branch
    %20 = sbr.rel (0) target = $region21
  $region20: #{bert_embedding_model_wrapper.12} parent=0 // pred_region
    _
  $region21: #{bert_embedding_model_wrapper.12} parent=0 // pred_fallthru
    _
  // Predicated region
  $region22: #{bert_embedding_model_wrapper.12} parent=0 // pred_check
    _
  $region23: #{bert_embedding_model_wrapper.12} parent=0 // pred_check_branch
    %22 = sbr.rel (0) target = $region25
  $region24: #{bert_embedding_model_wrapper.12} parent=0 // pred_region
    _
  $region25: #{bert_embedding_model_wrapper.12} parent=0 // pred_fallthru
    _
  %p24 = scmp.eq.s32.totalorder 0, 0
  // Predicated region
  $region26: #{bert_embedding_model_wrapper.12} parent=0 // pred_check
    %p25 = pneg %p24
  $region27: #{bert_embedding_model_wrapper.12} parent=0 // pred_check_branch
    %27 = sbr.rel (%p25) target = $region29
  $region28: #{bert_embedding_model_wrapper.12} parent=0 // pred_region
    %vm28 = vcmask 261120
    %29 = vst.msk [vmem:[#allocation2] sm:$0xff] %vm28, 0.0
    %30 = vst.msk [vmem:[#allocation2 + $0x8] sm:$0xff] %vm28, 0.0
  $region29: #{bert_embedding_model_wrapper.12} parent=0 // pred_fallthru
    _
  %v31 = vld [vmem:[#allocation2] sm:$0xff]
  %v32 = vld [vmem:[#allocation2 + $0x8] sm:$0xff]
  %v33 = vld [vmem:[%s0] sm:$0xf]
  %v34 = vld [vmem:[%s0 + $0x4] sm:$0xf]
  %v35 = vld [vmem:[%s1] sm:$0xf]
  %v36 = vld [vmem:[%s1 + $0x4] sm:$0xf]
  %v37 = vld [vmem:[%s1 + $0x8] sm:$0xf]
  %v38 = vld [vmem:[%s1 + $0xc] sm:$0xf]
  %v41 = vunpack.c.l.b16 %v33
  %v42 = vunpack.c.l.b16 %v34
  %v43 = vpack.c.b16 %v42, %v41
  %v48 = vunpack.c.l.b16 %v35
  %v49 = vunpack.c.l.b16 %v36
  %v50 = vunpack.c.l.b16 %v37
  %v51 = vunpack.c.l.b16 %v38
  %v52 = vpack.c.b16 %v49, %v48
  %v53 = vpack.c.b16 %v51, %v50
  %vm56 = vcmask 261120
  %v58 = vsel %vm56, %v43, 0
  %60 = vmatprep.subr.bf16.mxu0 0
  %61 = vmatpush1.bf16.msra.mxu0 %v52
  %62 = vmatprep.subr.bf16.mxu0 0
  %63 = vmatpush1.bf16.msra.mxu0 %v53
  %64 = vmatprep.subr.bf16.mxu0 0
  %65 = vmatpush1.bf16.msra.mxu0 0
  %66 = vmatprep.subr.bf16.mxu0 0
  %67 = vmatpush1.bf16.msra.mxu0 0
  %68 = vmatprep.subr.bf16.mxu0 0
  %69 = vmatpush1.bf16.msra.mxu0 0
  %70 = vmatprep.subr.bf16.mxu0 0
  %71 = vmatpush1.bf16.msra.mxu0 0
  %72 = vmatprep.subr.bf16.mxu0 0
  %73 = vmatpush1.bf16.msra.mxu0 0
  %74 = vmatprep.subr.bf16.mxu0 0
  %75 = vmatpush1.bf16.msra.mxu0 0
  %76 = vmatprep.subr.bf16.mxu0 0
  %77 = vmatpush1.bf16.msra.mxu0 0
  %78 = vmatprep.subr.bf16.mxu0 0
  %79 = vmatpush1.bf16.msra.mxu0 0
  %80 = vmatprep.subr.bf16.mxu0 0
  %81 = vmatpush1.bf16.msra.mxu0 0
  %82 = vmatprep.subr.bf16.mxu0 0
  %83 = vmatpush1.bf16.msra.mxu0 0
  %84 = vmatprep.subr.bf16.mxu0 0
  %85 = vmatpush1.bf16.msra.mxu0 0
  %86 = vmatprep.subr.bf16.mxu0 0
  %87 = vmatpush1.bf16.msra.mxu0 0
  %88 = vmatprep.subr.bf16.mxu0 0
  %89 = vmatpush1.bf16.msra.mxu0 0
  %90 = vmatprep.subr.bf16.mxu0 0
  %91 = vmatpush1.bf16.msra.mxu0 0
  %92 = vmatprep.mubr.bf16.mxu0 0
  %93 = vmatmul.mubr.bf16.gmra.mrb[0].mxu0 %v58
  %v94 = vpop.f32.mrb[0].mxu0
  %v95 = vadd.f32 0.0, %v94
  %v96 = vpop.f32.mrb[0].mxu0
  %v97 = vpop.f32.mrb[0].mxu0
  %v98 = vadd.f32 0.0, %v97
  %v99 = vpop.f32.mrb[0].mxu0
  %100 = vdwg.mxu0
  %v101 = vadd.f32 %v31, %v95
  %v102 = vadd.f32 %v32, %v98
  %103 = vst.msk [vmem:[#allocation2] sm:$0xff] %vm56, %v101
  %104 = vst.msk [vmem:[#allocation2 + $0x8] sm:$0xff] %vm56, %v102
  // Predicated region
  $region30: #{bert_embedding_model_wrapper.12} parent=0 // pred_check
    %p105 = pneg %p24
  $region31: #{bert_embedding_model_wrapper.12} parent=0 // pred_check_branch
    %107 = sbr.rel (%p105) target = $region33
  $region32: #{bert_embedding_model_wrapper.12} parent=0 // pred_region
    %v108 = vld [vmem:[#allocation2] sm:$0xff]
    %v109 = vld [vmem:[#allocation2 + $0x8] sm:$0xff]
    %v110 = vld [vmem:[%s2] sm:$0x1]
    %v112 = vlaneseq
    %v113 = vshrl.u32 %v112, 7
    %v114 = vsub.s32 0, %v113
    %v115 = vrot.slane %v110, %v114
    %v117 = vadd.f32 %v108, %v115
    %v118 = vadd.f32 %v109, %v115
    %v119 = vld [vmem:[%s3] sm:$0xf]
    %v120 = vld [vmem:[%s3 + $0x4] sm:$0xf]
    %v121 = vunpack.c.l.bf16 %v119
    %v122 = vunpack.c.l.bf16 %v120
    %v123 = vadd.f32 %v117, %v121
    %v124 = vadd.f32 %v118, %v122
    %v125 = vsel %vm56, %v123, 0.0
    %126 = vadd.xlane.f32.xlu0 %v125
    %v127 = vpop.xlane.xlu0 %126
    %v128 = vsel %vm56, %v124, 0.0
    %129 = vadd.xlane.f32.xlu0 %v128
    %v130 = vpop.xlane.xlu0 %129
    %v131 = vrcp.pop 32.0
    %v132 = vmul.f32 %v127, %v131
    %v133 = vmul.f32 %v130, %v131
    %v134 = vsub.f32 %v123, %v132
    %v135 = vsub.f32 %v124, %v133
    %v136 = vmul.f32 %v134, %v134
    %v137 = vmul.f32 %v135, %v135
    %v138 = vsel %vm56, %v136, 0.0
    %139 = vadd.xlane.f32.xlu0 %v138
    %v140 = vpop.xlane.xlu0 %139
    %v141 = vsel %vm56, %v137, 0.0
    %142 = vadd.xlane.f32.xlu0 %v141
    %v143 = vpop.xlane.xlu0 %142
    %v144 = vmul.f32 %v140, %v131
    %v145 = vmul.f32 %v143, %v131
    %v146 = vadd.f32 %v144, 1e-12
    %v147 = vadd.f32 %v145, 1e-12
    %v148 = vrsqrt.pop %v146
    %v149 = vrsqrt.pop %v147
    %v150 = vmul.f32 %v134, %v148
    %v151 = vmul.f32 %v135, %v149
    %v152 = vld [vmem:[%s4] sm:$0x1]
    %v154 = vlaneseq
    %v155 = vshrl.u32 %v154, 7
    %v156 = vsub.s32 0, %v155
    %v157 = vrot.slane %v152, %v156
    %v159 = vmul.f32 %v150, %v157
    %v160 = vmul.f32 %v151, %v157
    %v161 = vld [vmem:[%s5] sm:$0x1]
    %v163 = vlaneseq
    %v164 = vshrl.u32 %v163, 7
    %v165 = vsub.s32 0, %v164
    %v166 = vrot.slane %v161, %v165
    %v168 = vadd.f32 %v159, %v166
    %v169 = vadd.f32 %v160, %v166
    %v170 = vpack.c.bf16 %v169, %v168
    %v172 = vunpack.c.l.b16 %v170
    %v173 = vunpack.c.h.b16 %v170
    %v174 = vpack.c.b16 %v172, %v172
    %v175 = vpack.c.b16 %v173, %v173
    %vm178 = vcmask 257024
    %179 = vst.msk [vmem:[%s6] sm:$0xf] %vm178, %v174
    %180 = vst.msk [vmem:[%s6 + $0x4] sm:$0xf] %vm178, %v175
  $region33: #{bert_embedding_model_wrapper.12} parent=0 // pred_fallthru
    _
  // Predicated region
  $region34: #{bert_embedding_model_wrapper.12} parent=0 // pred_check
    _
  $region35: #{bert_embedding_model_wrapper.12} parent=0 // pred_check_branch
    %182 = sbr.rel (0) target = $region37
  $region36: #{bert_embedding_model_wrapper.12} parent=0 // pred_region
    _
  $region37: #{bert_embedding_model_wrapper.12} parent=0 // pred_fallthru
    _
  // Predicated region
  $region38: #{bert_embedding_model_wrapper.12} parent=0 // pred_check
    _
  $region39: #{bert_embedding_model_wrapper.12} parent=0 // pred_check_branch
    %184 = sbr.rel (0) target = $region41
  $region40: #{bert_embedding_model_wrapper.12} parent=0 // pred_region
    _
  $region41: #{bert_embedding_model_wrapper.12} parent=0 // pred_fallthru
    _

// kernel: bert_embedding_model_wrapper.11
$region0: #{bert_embedding_model_wrapper.11}
  #allocation0 [shape = 'u32[]', space=smem, size = 0x4, offset = 0x4, fixed_abs, tag = 'smem constant byte address 0x4 - core index']
  #allocation1 [shape = 'u32[144,128]{1,0:T(1,128)}', space=vmem, size = 0x12000, scoped, tag = 'internal scratch']
  %s0 = inlined_call_operand.vmem [shape: bf16[2,4,8,8], index: 0, kind: input, shape index: {}]
  %s1 = inlined_call_operand.vmem [shape: bf16[2,4,8,8], index: 1, kind: input, shape index: {}]
  %s2 = inlined_call_operand.vmem [shape: bf16[2,4,8,8], index: 2, kind: input, shape index: {}]
  %s3 = inlined_call_operand.vmem [shape: f32[2,1,1,8], index: 3, kind: input, shape index: {}]
  %s4 = inlined_call_operand.vmem [shape: bf16[2,4,8,8], index: 4, kind: output, shape index: {}]
  %s5 = sld [smem:[#allocation0]]
  $region49: #{bert_embedding_model_wrapper.11} parent=0
    _
  %s7 = ssub.s32 1, %s5
  %s8 = scalar_select 0, %s7, %s5
  loop: start=0, step=1, limit=4
  $region2: #{bert_embedding_model_wrapper.11} parent=0 // loop_pre_header
    _
  $region3: #{bert_embedding_model_wrapper.11} parent=0 // loop_header
    %s10 = sphi 0, %s14
    %p11 = scmp.ge.s32.totalorder %s10, 4
    %s17 = sphi 0, %s29
    %s18 = sphi 0, %s25
    %s19 = sphi 0, %s17
    %s20 = sphi 0, %s18
    %s21 = sphi 0, %s19
    %s22 = sphi 0, %s20
    %s34 = sphi 0, %s36
    %s37 = sphi 0, %s34
    %s38 = sphi 0, %s37
    %s54 = sphi 0, %s38
    %s62 = sphi 0, %s64
    %s65 = sphi 0, %s62
    %s66 = sphi 0, %s65
    %s82 = sphi 0, %s66
    %s90 = sphi 0, %s92
    %s93 = sphi 0, %s90
    %s94 = sphi 0, %s93
    %s110 = sphi 0, %s94
    %s116 = sphi 0, %s118
    %s119 = sphi 0, %s116
    %s120 = sphi 0, %s119
    %s136 = sphi 0, %s120
    %s144 = sphi 0, %s146
    %s147 = sphi 0, %s144
    %s148 = sphi 0, %s147
    %s164 = sphi 0, %s148
  $region4: #{bert_embedding_model_wrapper.11} parent=0 // loop_header_branch
    %13 = sbr.rel (%p11) target = $region8
  $region5: #{bert_embedding_model_wrapper.11} parent=0 // loop_body
    %s15 = ssub.s32 %s10, 1
    %s16 = ssub.s32 %s10, 2
    %s23 = sadd.s32 1, %s18
    %p24 = scmp.ge.s32.totalorder %s23, 1
    %s25 = scalar_select %p24, 0, %s23
    %s26 = sadd.s32 1, %s17
    %s27 = scalar_select %p24, %s26, %s17
    %p28 = scmp.ge.s32.totalorder %s27, 2
    %s29 = scalar_select %p28, 0, %s27
    %s30 = ssub.s32 %s17, %s29
    %s31 = ssub.s32 %s18, %s25
    %s32 = sor.u32 %s30, %s31
    %p33 = scmp.eq.s32.totalorder %s32, 0
    %s35 = sadd.s32 %s34, 1
    %s36 = scalar_select %p33, %s34, %s35
    %p39 = pneg %p33
    %p40 = scmp.eq.s32.totalorder %s10, 1
    %p41 = por %p39, %p40
    %p42 = scmp.ne.s32.totalorder %s34, %s37
    %p43 = scmp.eq.s32.totalorder %s10, 0
    %p44 = por %p42, %p43
    %p45 = scmp.ne.s32.totalorder %s34, %s37
    %p46 = scmp.eq.s32.totalorder %s15, 1
    %p47 = por %p45, %p46
    %p48 = scmp.ne.s32.totalorder %s37, %s38
    %p49 = scmp.eq.s32.totalorder %s15, 0
    %p50 = por %p48, %p49
    %p51 = scmp.ne.s32.totalorder %s37, %s38
    %p52 = scmp.eq.s32.totalorder %s16, 1
    %p53 = por %p51, %p52
    %p55 = scmp.ne.s32.totalorder %s38, %s54
    %p56 = scmp.eq.s32.totalorder %s16, 0
    %p57 = por %p55, %p56
    %s58 = ssub.s32 %s17, %s29
    %s59 = ssub.s32 %s18, %s25
    %s60 = sor.u32 %s58, %s59
    %p61 = scmp.eq.s32.totalorder %s60, 0
    %s63 = sadd.s32 %s62, 1
    %s64 = scalar_select %p61, %s62, %s63
    %p67 = pneg %p61
    %p68 = scmp.eq.s32.totalorder %s10, 1
    %p69 = por %p67, %p68
    %p70 = scmp.ne.s32.totalorder %s62, %s65
    %p71 = scmp.eq.s32.totalorder %s10, 0
    %p72 = por %p70, %p71
    %p73 = scmp.ne.s32.totalorder %s62, %s65
    %p74 = scmp.eq.s32.totalorder %s15, 1
    %p75 = por %p73, %p74
    %p76 = scmp.ne.s32.totalorder %s65, %s66
    %p77 = scmp.eq.s32.totalorder %s15, 0
    %p78 = por %p76, %p77
    %p79 = scmp.ne.s32.totalorder %s65, %s66
    %p80 = scmp.eq.s32.totalorder %s16, 1
    %p81 = por %p79, %p80
    %p83 = scmp.ne.s32.totalorder %s66, %s82
    %p84 = scmp.eq.s32.totalorder %s16, 0
    %p85 = por %p83, %p84
    %s86 = ssub.s32 %s17, %s29
    %s87 = ssub.s32 %s18, %s25
    %s88 = sor.u32 %s86, %s87
    %p89 = scmp.eq.s32.totalorder %s88, 0
    %s91 = sadd.s32 %s90, 1
    %s92 = scalar_select %p89, %s90, %s91
    %p95 = pneg %p89
    %p96 = scmp.eq.s32.totalorder %s10, 1
    %p97 = por %p95, %p96
    %p98 = scmp.ne.s32.totalorder %s90, %s93
    %p99 = scmp.eq.s32.totalorder %s10, 0
    %p100 = por %p98, %p99
    %p101 = scmp.ne.s32.totalorder %s90, %s93
    %p102 = scmp.eq.s32.totalorder %s15, 1
    %p103 = por %p101, %p102
    %p104 = scmp.ne.s32.totalorder %s93, %s94
    %p105 = scmp.eq.s32.totalorder %s15, 0
    %p106 = por %p104, %p105
    %p107 = scmp.ne.s32.totalorder %s93, %s94
    %p108 = scmp.eq.s32.totalorder %s16, 1
    %p109 = por %p107, %p108
    %p111 = scmp.ne.s32.totalorder %s94, %s110
    %p112 = scmp.eq.s32.totalorder %s16, 0
    %p113 = por %p111, %p112
    %s114 = ssub.s32 %s17, %s29
    %p115 = scmp.eq.s32.totalorder %s114, 0
    %s117 = sadd.s32 %s116, 1
    %s118 = scalar_select %p115, %s116, %s117
    %p121 = pneg %p115
    %p122 = scmp.eq.s32.totalorder %s10, 1
    %p123 = por %p121, %p122
    %p124 = scmp.ne.s32.totalorder %s116, %s119
    %p125 = scmp.eq.s32.totalorder %s10, 0
    %p126 = por %p124, %p125
    %p127 = scmp.ne.s32.totalorder %s116, %s119
    %p128 = scmp.eq.s32.totalorder %s15, 1
    %p129 = por %p127, %p128
    %p130 = scmp.ne.s32.totalorder %s119, %s120
    %p131 = scmp.eq.s32.totalorder %s15, 0
    %p132 = por %p130, %p131
    %p133 = scmp.ne.s32.totalorder %s119, %s120
    %p134 = scmp.eq.s32.totalorder %s16, 1
    %p135 = por %p133, %p134
    %p137 = scmp.ne.s32.totalorder %s120, %s136
    %p138 = scmp.eq.s32.totalorder %s16, 0
    %p139 = por %p137, %p138
    %s140 = ssub.s32 %s17, %s29
    %s141 = ssub.s32 %s18, %s25
    %s142 = sor.u32 %s140, %s141
    %p143 = scmp.eq.s32.totalorder %s142, 0
    %s145 = sadd.s32 %s144, 1
    %s146 = scalar_select %p143, %s144, %s145
    %p149 = pneg %p143
    %p150 = scmp.eq.s32.totalorder %s10, 1
    %p151 = por %p149, %p150
    %p152 = scmp.ne.s32.totalorder %s144, %s147
    %p153 = scmp.eq.s32.totalorder %s10, 0
    %p154 = por %p152, %p153
    %p155 = scmp.ne.s32.totalorder %s144, %s147
    %p156 = scmp.eq.s32.totalorder %s15, 1
    %p157 = por %p155, %p156
    %p158 = scmp.ne.s32.totalorder %s147, %s148
    %p159 = scmp.eq.s32.totalorder %s15, 0
    %p160 = por %p158, %p159
    %p161 = scmp.ne.s32.totalorder %s147, %s148
    %p162 = scmp.eq.s32.totalorder %s16, 1
    %p163 = por %p161, %p162
    %p165 = scmp.ne.s32.totalorder %s148, %s164
    %p166 = scmp.eq.s32.totalorder %s16, 0
    %p167 = por %p165, %p166
    %p168 = scmp.le.s32.totalorder 1, %s10
    %p169 = scmp.lt.s32.totalorder %s10, 3
    %p170 = pnand %p168, %p169
    %p171 = pneg %p170
    // Predicated region
    $region9: #{bert_embedding_model_wrapper.11} parent=5 // pred_check
      _
    $region10: #{bert_embedding_model_wrapper.11} parent=5 // pred_check_branch
      %173 = sbr.rel (%p170) target = $region12
    $region11: #{bert_embedding_model_wrapper.11} parent=5 // pred_region
      %s174 = ssub.s32 %s10, 1
    $region12: #{bert_embedding_model_wrapper.11} parent=5 // pred_fallthru
      _
    %p175 = scmp.lt.s32.totalorder %s10, 2
    // Predicated region
    $region13: #{bert_embedding_model_wrapper.11} parent=5 // pred_check
      %p176 = pneg %p175
    $region14: #{bert_embedding_model_wrapper.11} parent=5 // pred_check_branch
      %178 = sbr.rel (%p176) target = $region16
    $region15: #{bert_embedding_model_wrapper.11} parent=5 // pred_region
      // Predicated region
      $region17: #{bert_embedding_model_wrapper.11} parent=15 // pred_check
        %p179 = pneg %p44
      $region18: #{bert_embedding_model_wrapper.11} parent=15 // pred_check_branch
        %181 = sbr.rel (%p179) target = $region20
      $region19: #{bert_embedding_model_wrapper.11} parent=15 // pred_region
        %s182 = smul.u32 4, %s18
        %p183 = scmp.lt.s32.totalorder %s17, 1
        %s184 = scalar_select %p183, %s17, 1
        %p185 = scmp.lt.s32.totalorder %s182, 3
        %s186 = scalar_select %p185, %s182, 3
        %s187 = smul.addr %s184, 4
        %s188 = sadd.s32 %s186, %s187
        %s189 = smul.addr %s188, 4
        %s190 = scalar_lea.vmem %s0, %s189
        %s191 = smul.u32 4, %s18
      $region20: #{bert_embedding_model_wrapper.11} parent=15 // pred_fallthru
        _
      // Predicated region
      $region21: #{bert_embedding_model_wrapper.11} parent=15 // pred_check
        %p192 = pneg %p72
      $region22: #{bert_embedding_model_wrapper.11} parent=15 // pred_check_branch
        %194 = sbr.rel (%p192) target = $region24
      $region23: #{bert_embedding_model_wrapper.11} parent=15 // pred_region
        %s195 = smul.u32 4, %s18
        %p196 = scmp.lt.s32.totalorder %s17, 1
        %s197 = scalar_select %p196, %s17, 1
        %p198 = scmp.lt.s32.totalorder %s195, 3
        %s199 = scalar_select %p198, %s195, 3
        %s200 = smul.addr %s197, 4
        %s201 = sadd.s32 %s199, %s200
        %s202 = smul.addr %s201, 4
        %s203 = scalar_lea.vmem %s1, %s202
        %s204 = smul.u32 4, %s18
      $region24: #{bert_embedding_model_wrapper.11} parent=15 // pred_fallthru
        _
      // Predicated region
      $region25: #{bert_embedding_model_wrapper.11} parent=15 // pred_check
        %p205 = pneg %p100
      $region26: #{bert_embedding_model_wrapper.11} parent=15 // pred_check_branch
        %207 = sbr.rel (%p205) target = $region28
      $region27: #{bert_embedding_model_wrapper.11} parent=15 // pred_region
        %s208 = smul.u32 4, %s18
        %p209 = scmp.lt.s32.totalorder %s17, 1
        %s210 = scalar_select %p209, %s17, 1
        %p211 = scmp.lt.s32.totalorder %s208, 3
        %s212 = scalar_select %p211, %s208, 3
        %s213 = smul.addr %s210, 4
        %s214 = sadd.s32 %s212, %s213
        %s215 = smul.addr %s214, 4
        %s216 = scalar_lea.vmem %s2, %s215
        %s217 = smul.u32 4, %s18
      $region28: #{bert_embedding_model_wrapper.11} parent=15 // pred_fallthru
        _
      // Predicated region
      $region29: #{bert_embedding_model_wrapper.11} parent=15 // pred_check
        %p218 = pneg %p126
      $region30: #{bert_embedding_model_wrapper.11} parent=15 // pred_check_branch
        %220 = sbr.rel (%p218) target = $region32
      $region31: #{bert_embedding_model_wrapper.11} parent=15 // pred_region
        %p221 = scmp.lt.s32.totalorder %s17, 1
        %s222 = scalar_select %p221, %s17, 1
        %s223 = scalar_lea.vmem %s3, %s222
      $region32: #{bert_embedding_model_wrapper.11} parent=15 // pred_fallthru
        _
    $region16: #{bert_embedding_model_wrapper.11} parent=5 // pred_fallthru
      _
    %p224 = scmp.le.s32.totalorder 1, %s10
    %p225 = scmp.lt.s32.totalorder %s10, 3
    %p226 = pnand %p224, %p225
    %p227 = pneg %p226
    // Predicated region
    $region33: #{bert_embedding_model_wrapper.11} parent=5 // pred_check
      _
    $region34: #{bert_embedding_model_wrapper.11} parent=5 // pred_check_branch
      %229 = sbr.rel (%p226) target = $region36
    $region35: #{bert_embedding_model_wrapper.11} parent=5 // pred_region
      %s230 = ssub.s32 %s10, 1
      %s231 = smul.u32 4, %s20
      %p232 = scmp.lt.s32.totalorder %s19, 1
      %s233 = scalar_select %p232, %s19, 1
      %p234 = scmp.lt.s32.totalorder %s231, 3
      %s235 = scalar_select %p234, %s231, 3
      %s236 = smul.addr %s233, 4
      %s237 = sadd.s32 %s235, %s236
      %s238 = smul.addr %s237, 4
      %s239 = scalar_lea.vmem %s0, %s238
      %p240 = pneg %p50
      %p241 = pneg %p47
      %s242 = smul.u32 4, %s20
      %p243 = scmp.lt.s32.totalorder %s19, 1
      %s244 = scalar_select %p243, %s19, 1
      %p245 = scmp.lt.s32.totalorder %s242, 3
      %s246 = scalar_select %p245, %s242, 3
      %s247 = smul.addr %s244, 4
      %s248 = sadd.s32 %s246, %s247
      %s249 = smul.addr %s248, 4
      %s250 = scalar_lea.vmem %s1, %s249
      %p251 = pneg %p78
      %p252 = pneg %p75
      %s253 = smul.u32 4, %s20
      %p254 = scmp.lt.s32.totalorder %s19, 1
      %s255 = scalar_select %p254, %s19, 1
      %p256 = scmp.lt.s32.totalorder %s253, 3
      %s257 = scalar_select %p256, %s253, 3
      %s258 = smul.addr %s255, 4
      %s259 = sadd.s32 %s257, %s258
      %s260 = smul.addr %s259, 4
      %s261 = scalar_lea.vmem %s2, %s260
      %p262 = pneg %p106
      %p263 = pneg %p103
      %p264 = scmp.lt.s32.totalorder %s19, 1
      %s265 = scalar_select %p264, %s19, 1
      %s266 = scalar_lea.vmem %s3, %s265
      %p267 = pneg %p132
      %p268 = pneg %p129
      %p269 = pneg %p160
      %p270 = pneg %p157
      %s271 = smul.u32 4, %s20
      %p272 = scmp.lt.s32.totalorder %s19, 1
      %s273 = scalar_select %p272, %s19, 1
      %p274 = scmp.lt.s32.totalorder %s271, 3
      %s275 = scalar_select %p274, %s271, 3
      %s276 = smul.addr %s273, 4
      %s277 = sadd.s32 %s275, %s276
      %s278 = smul.addr %s277, 4
      %s279 = scalar_lea.vmem %s4, %s278
      %s280 = smul.u32 4, %s20
      %p281 = scmp.lt.s32.totalorder %s19, 1
      %s282 = scalar_select %p281, %s19, 1
      %p283 = scmp.lt.s32.totalorder %s280, 3
      %s284 = scalar_select %p283, %s280, 3
      %s285 = smul.addr %s282, 4
      %s286 = sadd.s32 %s284, %s285
      %s287 = smul.addr %s286, 4
      %s288 = scalar_lea.vmem %s0, %s287
      %s289 = smul.u32 4, %s20
      %s290 = smul.u32 4, %s20
      %p291 = scmp.lt.s32.totalorder %s19, 1
      %s292 = scalar_select %p291, %s19, 1
      %p293 = scmp.lt.s32.totalorder %s290, 3
      %s294 = scalar_select %p293, %s290, 3
      %s295 = smul.addr %s292, 4
      %s296 = sadd.s32 %s294, %s295
      %s297 = smul.addr %s296, 4
      %s298 = scalar_lea.vmem %s1, %s297
      %s299 = smul.u32 4, %s20
      %s300 = smul.u32 4, %s20
      %p301 = scmp.lt.s32.totalorder %s19, 1
      %s302 = scalar_select %p301, %s19, 1
      %p303 = scmp.lt.s32.totalorder %s300, 3
      %s304 = scalar_select %p303, %s300, 3
      %s305 = smul.addr %s302, 4
      %s306 = sadd.s32 %s304, %s305
      %s307 = smul.addr %s306, 4
      %s308 = scalar_lea.vmem %s2, %s307
      %s309 = smul.u32 4, %s20
      %p310 = scmp.lt.s32.totalorder %s19, 1
      %s311 = scalar_select %p310, %s19, 1
      %s312 = scalar_lea.vmem %s3, %s311
      %s313 = smul.u32 4, %s20
      %p314 = scmp.lt.s32.totalorder %s19, 1
      %s315 = scalar_select %p314, %s19, 1
      %p316 = scmp.lt.s32.totalorder %s313, 3
      %s317 = scalar_select %p316, %s313, 3
      %s318 = smul.addr %s315, 4
      %s319 = sadd.s32 %s317, %s318
      %s320 = smul.addr %s319, 4
      %s321 = scalar_lea.vmem %s4, %s320
      %s322 = smul.u32 4, %s20
      %v324 = vld [vmem:[%s288] sm:$0xf]
      %v325 = vld [vmem:[%s288 + $0x4] sm:$0xf]
      %v326 = vld [vmem:[%s288 + $0x8] sm:$0xf]
      %v327 = vld [vmem:[%s288 + $0xc] sm:$0xf]
      %v328 = vunpack.c.l.bf16 %v324
      %v329 = vunpack.c.l.bf16 %v325
      %v330 = vunpack.c.l.bf16 %v326
      %v331 = vunpack.c.l.bf16 %v327
      %v332 = vmul.f32 %v328, 0.35355338
      %v333 = vmul.f32 %v329, 0.35355338
      %v334 = vmul.f32 %v330, 0.35355338
      %v335 = vmul.f32 %v331, 0.35355338
      %v336 = vpack.c.bf16 %v332, %v332
      %v337 = vpack.c.bf16 %v333, %v333
      %v338 = vpack.c.bf16 %v334, %v334
      %v339 = vpack.c.bf16 %v335, %v335
      %v340 = vld [vmem:[%s298] sm:$0xf]
      %v341 = vld [vmem:[%s298 + $0x4] sm:$0xf]
      %v342 = vld [vmem:[%s298 + $0x8] sm:$0xf]
      %v343 = vld [vmem:[%s298 + $0xc] sm:$0xf]
      %v344 = vld [vmem:[%s308] sm:$0xf]
      %v345 = vld [vmem:[%s308 + $0x4] sm:$0xf]
      %v346 = vld [vmem:[%s308 + $0x8] sm:$0xf]
      %v347 = vld [vmem:[%s308 + $0xc] sm:$0xf]
      %v348 = vld [vmem:[%s312] sm:$0x1]
      %v350 = vlaneseq
      %v351 = vshrl.u32 %v350, 7
      %v352 = vsub.s32 0, %v351
      %v353 = vrot.slane %v348, %v352
      %vm355 = vcmask 64512
      %v357 = vsel %vm355, %v336, 0
      %v360 = vsel %vm355, %v340, 0
      %362 = vmatprep.subr.bf16.mxu0 0
      %363 = vmatpush1.bf16.xpose.msra.mxu0 %v360
      %364 = vmatprep.subr.bf16.mxu0 0
      %365 = vmatpush1.bf16.xpose.msra.mxu0 0
      %366 = vmatprep.subr.bf16.mxu0 0
      %367 = vmatpush1.bf16.xpose.msra.mxu0 0
      %368 = vmatprep.subr.bf16.mxu0 0
      %369 = vmatpush1.bf16.xpose.msra.mxu0 0
      %370 = vmatprep.subr.bf16.mxu0 0
      %371 = vmatpush1.bf16.xpose.msra.mxu0 0
      %372 = vmatprep.subr.bf16.mxu0 0
      %373 = vmatpush1.bf16.xpose.msra.mxu0 0
      %374 = vmatprep.subr.bf16.mxu0 0
      %375 = vmatpush1.bf16.xpose.msra.mxu0 0
      %376 = vmatprep.subr.bf16.mxu0 0
      %377 = vmatpush1.bf16.xpose.msra.mxu0 0
      %378 = vmatprep.subr.bf16.mxu0 0
      %379 = vmatpush1.bf16.xpose.msra.mxu0 0
      %380 = vmatprep.subr.bf16.mxu0 0
      %381 = vmatpush1.bf16.xpose.msra.mxu0 0
      %382 = vmatprep.subr.bf16.mxu0 0
      %383 = vmatpush1.bf16.xpose.msra.mxu0 0
      %384 = vmatprep.subr.bf16.mxu0 0
      %385 = vmatpush1.bf16.xpose.msra.mxu0 0
      %386 = vmatprep.subr.bf16.mxu0 0
      %387 = vmatpush1.bf16.xpose.msra.mxu0 0
      %388 = vmatprep.subr.bf16.mxu0 0
      %389 = vmatpush1.bf16.xpose.msra.mxu0 0
      %390 = vmatprep.subr.bf16.mxu0 0
      %391 = vmatpush1.bf16.xpose.msra.mxu0 0
      %392 = vmatprep.subr.bf16.mxu0 0
      %393 = vmatpush1.bf16.xpose.msra.mxu0 0
      %394 = vmatprep.mubr.bf16.mxu0 0
      %395 = vmatmul.mubr.bf16.gmra.mrb[0].mxu0 %v357
      %v396 = vpop.f32.mrb[0].mxu0
      %v397 = vadd.f32 %v353, %v396
      %v398 = vpop.f32.mrb[0].mxu0
      %v399 = vpop.f32.mrb[0].mxu0
      %v400 = vpop.f32.mrb[0].mxu0
      %401 = vdwg.mxu0
      %v403 = vsel %vm355, %v337, 0
      %v406 = vsel %vm355, %v341, 0
      %408 = vmatprep.subr.bf16.mxu0 0
      %409 = vmatpush1.bf16.xpose.msra.mxu0 %v406
      %410 = vmatprep.subr.bf16.mxu0 0
      %411 = vmatpush1.bf16.xpose.msra.mxu0 0
      %412 = vmatprep.subr.bf16.mxu0 0
      %413 = vmatpush1.bf16.xpose.msra.mxu0 0
      %414 = vmatprep.subr.bf16.mxu0 0
      %415 = vmatpush1.bf16.xpose.msra.mxu0 0
      %416 = vmatprep.subr.bf16.mxu0 0
      %417 = vmatpush1.bf16.xpose.msra.mxu0 0
      %418 = vmatprep.subr.bf16.mxu0 0
      %419 = vmatpush1.bf16.xpose.msra.mxu0 0
      %420 = vmatprep.subr.bf16.mxu0 0
      %421 = vmatpush1.bf16.xpose.msra.mxu0 0
      %422 = vmatprep.subr.bf16.mxu0 0
      %423 = vmatpush1.bf16.xpose.msra.mxu0 0
      %424 = vmatprep.subr.bf16.mxu0 0
      %425 = vmatpush1.bf16.xpose.msra.mxu0 0
      %426 = vmatprep.subr.bf16.mxu0 0
      %427 = vmatpush1.bf16.xpose.msra.mxu0 0
      %428 = vmatprep.subr.bf16.mxu0 0
      %429 = vmatpush1.bf16.xpose.msra.mxu0 0
      %430 = vmatprep.subr.bf16.mxu0 0
      %431 = vmatpush1.bf16.xpose.msra.mxu0 0
      %432 = vmatprep.subr.bf16.mxu0 0
      %433 = vmatpush1.bf16.xpose.msra.mxu0 0
      %434 = vmatprep.subr.bf16.mxu0 0
      %435 = vmatpush1.bf16.xpose.msra.mxu0 0
      %436 = vmatprep.subr.bf16.mxu0 0
      %437 = vmatpush1.bf16.xpose.msra.mxu0 0
      %438 = vmatprep.subr.bf16.mxu0 0
      %439 = vmatpush1.bf16.xpose.msra.mxu0 0
      %440 = vmatprep.mubr.bf16.mxu0 0
      %441 = vmatmul.mubr.bf16.gmra.mrb[0].mxu0 %v403
      %v442 = vpop.f32.mrb[0].mxu0
      %v443 = vadd.f32 %v353, %v442
      %v444 = vpop.f32.mrb[0].mxu0
      %v445 = vpop.f32.mrb[0].mxu0
      %v446 = vpop.f32.mrb[0].mxu0
      %447 = vdwg.mxu0
      %v449 = vsel %vm355, %v338, 0
      %v452 = vsel %vm355, %v342, 0
      %454 = vmatprep.subr.bf16.mxu0 0
      %455 = vmatpush1.bf16.xpose.msra.mxu0 %v452
      %456 = vmatprep.subr.bf16.mxu0 0
      %457 = vmatpush1.bf16.xpose.msra.mxu0 0
      %458 = vmatprep.subr.bf16.mxu0 0
      %459 = vmatpush1.bf16.xpose.msra.mxu0 0
      %460 = vmatprep.subr.bf16.mxu0 0
      %461 = vmatpush1.bf16.xpose.msra.mxu0 0
      %462 = vmatprep.subr.bf16.mxu0 0
      %463 = vmatpush1.bf16.xpose.msra.mxu0 0
      %464 = vmatprep.subr.bf16.mxu0 0
      %465 = vmatpush1.bf16.xpose.msra.mxu0 0
      %466 = vmatprep.subr.bf16.mxu0 0
      %467 = vmatpush1.bf16.xpose.msra.mxu0 0
      %468 = vmatprep.subr.bf16.mxu0 0
      %469 = vmatpush1.bf16.xpose.msra.mxu0 0
      %470 = vmatprep.subr.bf16.mxu0 0
      %471 = vmatpush1.bf16.xpose.msra.mxu0 0
      %472 = vmatprep.subr.bf16.mxu0 0
      %473 = vmatpush1.bf16.xpose.msra.mxu0 0
      %474 = vmatprep.subr.bf16.mxu0 0
      %475 = vmatpush1.bf16.xpose.msra.mxu0 0
      %476 = vmatprep.subr.bf16.mxu0 0
      %477 = vmatpush1.bf16.xpose.msra.mxu0 0
      %478 = vmatprep.subr.bf16.mxu0 0
      %479 = vmatpush1.bf16.xpose.msra.mxu0 0
      %480 = vmatprep.subr.bf16.mxu0 0
      %481 = vmatpush1.bf16.xpose.msra.mxu0 0
      %482 = vmatprep.subr.bf16.mxu0 0
      %483 = vmatpush1.bf16.xpose.msra.mxu0 0
      %484 = vmatprep.subr.bf16.mxu0 0
      %485 = vmatpush1.bf16.xpose.msra.mxu0 0
      %486 = vmatprep.mubr.bf16.mxu0 0
      %487 = vmatmul.mubr.bf16.gmra.mrb[0].mxu0 %v449
      %v488 = vpop.f32.mrb[0].mxu0
      %v489 = vadd.f32 %v353, %v488
      %v490 = vpop.f32.mrb[0].mxu0
      %v491 = vpop.f32.mrb[0].mxu0
      %v492 = vpop.f32.mrb[0].mxu0
      %493 = vdwg.mxu0
      %v495 = vsel %vm355, %v339, 0
      %v498 = vsel %vm355, %v343, 0
      %500 = vmatprep.subr.bf16.mxu0 0
      %501 = vmatpush1.bf16.xpose.msra.mxu0 %v498
      %502 = vmatprep.subr.bf16.mxu0 0
      %503 = vmatpush1.bf16.xpose.msra.mxu0 0
      %504 = vmatprep.subr.bf16.mxu0 0
      %505 = vmatpush1.bf16.xpose.msra.mxu0 0
      %506 = vmatprep.subr.bf16.mxu0 0
      %507 = vmatpush1.bf16.xpose.msra.mxu0 0
      %508 = vmatprep.subr.bf16.mxu0 0
      %509 = vmatpush1.bf16.xpose.msra.mxu0 0
      %510 = vmatprep.subr.bf16.mxu0 0
      %511 = vmatpush1.bf16.xpose.msra.mxu0 0
      %512 = vmatprep.subr.bf16.mxu0 0
      %513 = vmatpush1.bf16.xpose.msra.mxu0 0
      %514 = vmatprep.subr.bf16.mxu0 0
      %515 = vmatpush1.bf16.xpose.msra.mxu0 0
      %516 = vmatprep.subr.bf16.mxu0 0
      %517 = vmatpush1.bf16.xpose.msra.mxu0 0
      %518 = vmatprep.subr.bf16.mxu0 0
      %519 = vmatpush1.bf16.xpose.msra.mxu0 0
      %520 = vmatprep.subr.bf16.mxu0 0
      %521 = vmatpush1.bf16.xpose.msra.mxu0 0
      %522 = vmatprep.subr.bf16.mxu0 0
      %523 = vmatpush1.bf16.xpose.msra.mxu0 0
      %524 = vmatprep.subr.bf16.mxu0 0
      %525 = vmatpush1.bf16.xpose.msra.mxu0 0
      %526 = vmatprep.subr.bf16.mxu0 0
      %527 = vmatpush1.bf16.xpose.msra.mxu0 0
      %528 = vmatprep.subr.bf16.mxu0 0
      %529 = vmatpush1.bf16.xpose.msra.mxu0 0
      %530 = vmatprep.subr.bf16.mxu0 0
      %531 = vmatpush1.bf16.xpose.msra.mxu0 0
      %532 = vmatprep.mubr.bf16.mxu0 0
      %533 = vmatmul.mubr.bf16.gmra.mrb[0].mxu0 %v495
      %v534 = vpop.f32.mrb[0].mxu0
      %v535 = vadd.f32 %v353, %v534
      %v536 = vpop.f32.mrb[0].mxu0
      %v537 = vpop.f32.mrb[0].mxu0
      %v538 = vpop.f32.mrb[0].mxu0
      %539 = vdwg.mxu0
      %v540 = vsel %vm355, %v397, -inf
      %541 = vmax.xlane.f32.xlu0 %v540
      %v542 = vpop.xlane.xlu0 %541
      %v543 = vsel %vm355, %v443, -inf
      %544 = vmax.xlane.f32.xlu0 %v543
      %v545 = vpop.xlane.xlu0 %544
      %v546 = vsel %vm355, %v489, -inf
      %547 = vmax.xlane.f32.xlu0 %v546
      %v548 = vpop.xlane.xlu0 %547
      %v549 = vsel %vm355, %v535, -inf
      %550 = vmax.xlane.f32.xlu0 %v549
      %v551 = vpop.xlane.xlu0 %550
      %v552 = vsub.f32 %v397, %v542
      %v553 = vsub.f32 %v443, %v545
      %v554 = vsub.f32 %v489, %v548
      %v555 = vsub.f32 %v535, %v551
      %v556 = vmul.f32 %v552, 1.442695
      %v557 = vpow.pop %v556
      %v558 = vmul.f32 %v553, 1.442695
      %v559 = vpow.pop %v558
      %v560 = vmul.f32 %v554, 1.442695
      %v561 = vpow.pop %v560
      %v562 = vmul.f32 %v555, 1.442695
      %v563 = vpow.pop %v562
      %v564 = vsel %vm355, %v557, 0.0
      %565 = vadd.xlane.f32.xlu0 %v564
      %v566 = vpop.xlane.xlu0 %565
      %v567 = vsel %vm355, %v559, 0.0
      %568 = vadd.xlane.f32.xlu0 %v567
      %v569 = vpop.xlane.xlu0 %568
      %v570 = vsel %vm355, %v561, 0.0
      %571 = vadd.xlane.f32.xlu0 %v570
      %v572 = vpop.xlane.xlu0 %571
      %v573 = vsel %vm355, %v563, 0.0
      %574 = vadd.xlane.f32.xlu0 %v573
      %v575 = vpop.xlane.xlu0 %574
      %v576 = vrcp.pop %v566
      %v577 = vrcp.pop %v569
      %v578 = vrcp.pop %v572
      %v579 = vrcp.pop %v575
      %v580 = vpack.c.bf16 %v557, %v557
      %v581 = vpack.c.bf16 %v559, %v559
      %v582 = vpack.c.bf16 %v561, %v561
      %v583 = vpack.c.bf16 %v563, %v563
      %v585 = vsel %vm355, %v580, 0
      %vm587 = vcmask 1043456
      %v589 = vsel %vm587, %v344, 0
      %591 = vmatprep.subr.bf16.mxu0 0
      %592 = vmatpush1.bf16.msra.mxu0 %v589
      %593 = vmatprep.subr.bf16.mxu0 0
      %594 = vmatpush1.bf16.msra.mxu0 0
      %595 = vmatprep.subr.bf16.mxu0 0
      %596 = vmatpush1.bf16.msra.mxu0 0
      %597 = vmatprep.subr.bf16.mxu0 0
      %598 = vmatpush1.bf16.msra.mxu0 0
      %599 = vmatprep.subr.bf16.mxu0 0
      %600 = vmatpush1.bf16.msra.mxu0 0
      %601 = vmatprep.subr.bf16.mxu0 0
      %602 = vmatpush1.bf16.msra.mxu0 0
      %603 = vmatprep.subr.bf16.mxu0 0
      %604 = vmatpush1.bf16.msra.mxu0 0
      %605 = vmatprep.subr.bf16.mxu0 0
      %606 = vmatpush1.bf16.msra.mxu0 0
      %607 = vmatprep.subr.bf16.mxu0 0
      %608 = vmatpush1.bf16.msra.mxu0 0
      %609 = vmatprep.subr.bf16.mxu0 0
      %610 = vmatpush1.bf16.msra.mxu0 0
      %611 = vmatprep.subr.bf16.mxu0 0
      %612 = vmatpush1.bf16.msra.mxu0 0
      %613 = vmatprep.subr.bf16.mxu0 0
      %614 = vmatpush1.bf16.msra.mxu0 0
      %615 = vmatprep.subr.bf16.mxu0 0
      %616 = vmatpush1.bf16.msra.mxu0 0
      %617 = vmatprep.subr.bf16.mxu0 0
      %618 = vmatpush1.bf16.msra.mxu0 0
      %619 = vmatprep.subr.bf16.mxu0 0
      %620 = vmatpush1.bf16.msra.mxu0 0
      %621 = vmatprep.subr.bf16.mxu0 0
      %622 = vmatpush1.bf16.msra.mxu0 0
      %623 = vmatprep.mubr.bf16.mxu0 0
      %624 = vmatmul.mubr.bf16.gmra.mrb[0].mxu0 %v585
      %v625 = vpop.f32.mrb[0].mxu0
      %v626 = vadd.f32 0.0, %v625
      %v627 = vpop.f32.mrb[0].mxu0
      %v628 = vpop.f32.mrb[0].mxu0
      %v629 = vpop.f32.mrb[0].mxu0
      %630 = vdwg.mxu0
      %v632 = vsel %vm355, %v581, 0
      %v635 = vsel %vm587, %v345, 0
      %637 = vmatprep.subr.bf16.mxu0 0
      %638 = vmatpush1.bf16.msra.mxu0 %v635
      %639 = vmatprep.subr.bf16.mxu0 0
      %640 = vmatpush1.bf16.msra.mxu0 0
      %641 = vmatprep.subr.bf16.mxu0 0
      %642 = vmatpush1.bf16.msra.mxu0 0
      %643 = vmatprep.subr.bf16.mxu0 0
      %644 = vmatpush1.bf16.msra.mxu0 0
      %645 = vmatprep.subr.bf16.mxu0 0
      %646 = vmatpush1.bf16.msra.mxu0 0
      %647 = vmatprep.subr.bf16.mxu0 0
      %648 = vmatpush1.bf16.msra.mxu0 0
      %649 = vmatprep.subr.bf16.mxu0 0
      %650 = vmatpush1.bf16.msra.mxu0 0
      %651 = vmatprep.subr.bf16.mxu0 0
      %652 = vmatpush1.bf16.msra.mxu0 0
      %653 = vmatprep.subr.bf16.mxu0 0
      %654 = vmatpush1.bf16.msra.mxu0 0
      %655 = vmatprep.subr.bf16.mxu0 0
      %656 = vmatpush1.bf16.msra.mxu0 0
      %657 = vmatprep.subr.bf16.mxu0 0
      %658 = vmatpush1.bf16.msra.mxu0 0
      %659 = vmatprep.subr.bf16.mxu0 0
      %660 = vmatpush1.bf16.msra.mxu0 0
      %661 = vmatprep.subr.bf16.mxu0 0
      %662 = vmatpush1.bf16.msra.mxu0 0
      %663 = vmatprep.subr.bf16.mxu0 0
      %664 = vmatpush1.bf16.msra.mxu0 0
      %665 = vmatprep.subr.bf16.mxu0 0
      %666 = vmatpush1.bf16.msra.mxu0 0
      %667 = vmatprep.subr.bf16.mxu0 0
      %668 = vmatpush1.bf16.msra.mxu0 0
      %669 = vmatprep.mubr.bf16.mxu0 0
      %670 = vmatmul.mubr.bf16.gmra.mrb[0].mxu0 %v632
      %v671 = vpop.f32.mrb[0].mxu0
      %v672 = vadd.f32 0.0, %v671
      %v673 = vpop.f32.mrb[0].mxu0
      %v674 = vpop.f32.mrb[0].mxu0
      %v675 = vpop.f32.mrb[0].mxu0
      %676 = vdwg.mxu0
      %v678 = vsel %vm355, %v582, 0
      %v681 = vsel %vm587, %v346, 0
      %683 = vmatprep.subr.bf16.mxu0 0
      %684 = vmatpush1.bf16.msra.mxu0 %v681
      %685 = vmatprep.subr.bf16.mxu0 0
      %686 = vmatpush1.bf16.msra.mxu0 0
      %687 = vmatprep.subr.bf16.mxu0 0
      %688 = vmatpush1.bf16.msra.mxu0 0
      %689 = vmatprep.subr.bf16.mxu0 0
      %690 = vmatpush1.bf16.msra.mxu0 0
      %691 = vmatprep.subr.bf16.mxu0 0
      %692 = vmatpush1.bf16.msra.mxu0 0
      %693 = vmatprep.subr.bf16.mxu0 0
      %694 = vmatpush1.bf16.msra.mxu0 0
      %695 = vmatprep.subr.bf16.mxu0 0
      %696 = vmatpush1.bf16.msra.mxu0 0
      %697 = vmatprep.subr.bf16.mxu0 0
      %698 = vmatpush1.bf16.msra.mxu0 0
      %699 = vmatprep.subr.bf16.mxu0 0
      %700 = vmatpush1.bf16.msra.mxu0 0
      %701 = vmatprep.subr.bf16.mxu0 0
      %702 = vmatpush1.bf16.msra.mxu0 0
      %703 = vmatprep.subr.bf16.mxu0 0
      %704 = vmatpush1.bf16.msra.mxu0 0
      %705 = vmatprep.subr.bf16.mxu0 0
      %706 = vmatpush1.bf16.msra.mxu0 0
      %707 = vmatprep.subr.bf16.mxu0 0
      %708 = vmatpush1.bf16.msra.mxu0 0
      %709 = vmatprep.subr.bf16.mxu0 0
      %710 = vmatpush1.bf16.msra.mxu0 0
      %711 = vmatprep.subr.bf16.mxu0 0
      %712 = vmatpush1.bf16.msra.mxu0 0
      %713 = vmatprep.subr.bf16.mxu0 0
      %714 = vmatpush1.bf16.msra.mxu0 0
      %715 = vmatprep.mubr.bf16.mxu0 0
      %716 = vmatmul.mubr.bf16.gmra.mrb[0].mxu0 %v678
      %v717 = vpop.f32.mrb[0].mxu0
      %v718 = vadd.f32 0.0, %v717
      %v719 = vpop.f32.mrb[0].mxu0
      %v720 = vpop.f32.mrb[0].mxu0
      %v721 = vpop.f32.mrb[0].mxu0
      %722 = vdwg.mxu0
      %v724 = vsel %vm355, %v583, 0
      %v727 = vsel %vm587, %v347, 0
      %729 = vmatprep.subr.bf16.mxu0 0
      %730 = vmatpush1.bf16.msra.mxu0 %v727
      %731 = vmatprep.subr.bf16.mxu0 0
      %732 = vmatpush1.bf16.msra.mxu0 0
      %733 = vmatprep.subr.bf16.mxu0 0
      %734 = vmatpush1.bf16.msra.mxu0 0
      %735 = vmatprep.subr.bf16.mxu0 0
      %736 = vmatpush1.bf16.msra.mxu0 0
      %737 = vmatprep.subr.bf16.mxu0 0
      %738 = vmatpush1.bf16.msra.mxu0 0
      %739 = vmatprep.subr.bf16.mxu0 0
      %740 = vmatpush1.bf16.msra.mxu0 0
      %741 = vmatprep.subr.bf16.mxu0 0
      %742 = vmatpush1.bf16.msra.mxu0 0
      %743 = vmatprep.subr.bf16.mxu0 0
      %744 = vmatpush1.bf16.msra.mxu0 0
      %745 = vmatprep.subr.bf16.mxu0 0
      %746 = vmatpush1.bf16.msra.mxu0 0
      %747 = vmatprep.subr.bf16.mxu0 0
      %748 = vmatpush1.bf16.msra.mxu0 0
      %749 = vmatprep.subr.bf16.mxu0 0
      %750 = vmatpush1.bf16.msra.mxu0 0
      %751 = vmatprep.subr.bf16.mxu0 0
      %752 = vmatpush1.bf16.msra.mxu0 0
      %753 = vmatprep.subr.bf16.mxu0 0
      %754 = vmatpush1.bf16.msra.mxu0 0
      %755 = vmatprep.subr.bf16.mxu0 0
      %756 = vmatpush1.bf16.msra.mxu0 0
      %757 = vmatprep.subr.bf16.mxu0 0
      %758 = vmatpush1.bf16.msra.mxu0 0
      %759 = vmatprep.subr.bf16.mxu0 0
      %760 = vmatpush1.bf16.msra.mxu0 0
      %761 = vmatprep.mubr.bf16.mxu0 0
      %762 = vmatmul.mubr.bf16.gmra.mrb[0].mxu0 %v724
      %v763 = vpop.f32.mrb[0].mxu0
      %v764 = vadd.f32 0.0, %v763
      %v765 = vpop.f32.mrb[0].mxu0
      %v766 = vpop.f32.mrb[0].mxu0
      %v767 = vpop.f32.mrb[0].mxu0
      %768 = vdwg.mxu0
      %v769 = vmul.f32 %v626, %v576
      %v770 = vmul.f32 %v672, %v577
      %v771 = vmul.f32 %v718, %v578
      %v772 = vmul.f32 %v764, %v579
      %v773 = vpack.c.bf16 %v769, %v769
      %v774 = vpack.c.bf16 %v770, %v770
      %v775 = vpack.c.bf16 %v771, %v771
      %v776 = vpack.c.bf16 %v772, %v772
      %vm777 = vcmask 60416
      %778 = vst.msk [vmem:[%s321] sm:$0xf] %vm777, %v773
      %779 = vst.msk [vmem:[%s321 + $0x4] sm:$0xf] %vm777, %v774
      %780 = vst.msk [vmem:[%s321 + $0x8] sm:$0xf] %vm777, %v775
      %781 = vst.msk [vmem:[%s321 + $0xc] sm:$0xf] %vm777, %v776
      %s782 = smul.u32 4, %s20
      %p783 = scmp.lt.s32.totalorder %s19, 1
      %s784 = scalar_select %p783, %s19, 1
      %p785 = scmp.lt.s32.totalorder %s782, 3
      %s786 = scalar_select %p785, %s782, 3
      %s787 = smul.addr %s784, 4
      %s788 = sadd.s32 %s786, %s787
      %s789 = smul.addr %s788, 4
      %s790 = scalar_lea.vmem %s4, %s789
      // Predicated region
      $region37: #{bert_embedding_model_wrapper.11} parent=35 // pred_check
        %p791 = pneg %p157
      $region38: #{bert_embedding_model_wrapper.11} parent=35 // pred_check_branch
        %793 = sbr.rel (%p791) target = $region40
      $region39: #{bert_embedding_model_wrapper.11} parent=35 // pred_region
        %s794 = smul.u32 4, %s20
      $region40: #{bert_embedding_model_wrapper.11} parent=35 // pred_fallthru
        _
    $region36: #{bert_embedding_model_wrapper.11} parent=5 // pred_fallthru
      _
    %p795 = scmp.le.s32.totalorder 2, %s10
    // Predicated region
    $region41: #{bert_embedding_model_wrapper.11} parent=5 // pred_check
      %p796 = pneg %p795
    $region42: #{bert_embedding_model_wrapper.11} parent=5 // pred_check_branch
      %798 = sbr.rel (%p796) target = $region44
    $region43: #{bert_embedding_model_wrapper.11} parent=5 // pred_region
      %s799 = ssub.s32 %s10, 2
      // Predicated region
      $region45: #{bert_embedding_model_wrapper.11} parent=43 // pred_check
        %p800 = pneg %p163
      $region46: #{bert_embedding_model_wrapper.11} parent=43 // pred_check_branch
        %802 = sbr.rel (%p800) target = $region48
      $region47: #{bert_embedding_model_wrapper.11} parent=43 // pred_region
        %s803 = smul.u32 4, %s22
        %p804 = scmp.lt.s32.totalorder %s21, 1
        %s805 = scalar_select %p804, %s21, 1
        %p806 = scmp.lt.s32.totalorder %s803, 3
        %s807 = scalar_select %p806, %s803, 3
        %s808 = smul.addr %s805, 4
        %s809 = sadd.s32 %s807, %s808
        %s810 = smul.addr %s809, 4
        %s811 = scalar_lea.vmem %s4, %s810
      $region48: #{bert_embedding_model_wrapper.11} parent=43 // pred_fallthru
        _
    $region44: #{bert_embedding_model_wrapper.11} parent=5 // pred_fallthru
      _
  $region6: #{bert_embedding_model_wrapper.11} parent=0 // loop_footer
    %s14 = sadd.s32 1, %s10
  $region7: #{bert_embedding_model_wrapper.11} parent=0 // loop_footer_branch
    %9 = sbr.rel target = $region3
  $region8: #{bert_embedding_model_wrapper.11} parent=0 // loop_exit
    _

// kernel: bert_embedding_model_wrapper.14
$region0: #{bert_embedding_model_wrapper.14}
  #allocation0 [shape = 'u32[]', space=smem, size = 0x4, offset = 0x4, fixed_abs, tag = 'smem constant byte address 0x4 - core index']
  #allocation1 [shape = 'u32[144,128]{1,0:T(1,128)}', space=vmem, size = 0x12000, scoped, tag = 'internal scratch']
  #allocation2 [shape = 'f32[16,32]{1,0:T(8,128)}', space=vmem, size = 0x2000, scoped, tag = 'scratch operand']
  %s0 = inlined_call_operand.vmem [shape: bf16[16,64], index: 0, kind: input, shape index: {}]
  %s1 = inlined_call_operand.vmem [shape: bf16[64,32], index: 1, kind: input, shape index: {}]
  %s2 = inlined_call_operand.vmem [shape: f32[1,32], index: 2, kind: input, shape index: {}]
  %s3 = inlined_call_operand.vmem [shape: bf16[16,32], index: 3, kind: input, shape index: {}]
  %s4 = inlined_call_operand.vmem [shape: f32[1,32], index: 4, kind: input, shape index: {}]
  %s5 = inlined_call_operand.vmem [shape: f32[1,32], index: 5, kind: input, shape index: {}]
  %s6 = inlined_call_operand.vmem [shape: bf16[16,32], index: 6, kind: output, shape index: {}]
  %s7 = sld [smem:[#allocation0]]
  $region42: #{bert_embedding_model_wrapper.14} parent=0
    _
  %s9 = ssub.s32 1, %s7
  %s10 = scalar_select 0, %s9, %s7
  // Predicated region
  $region2: #{bert_embedding_model_wrapper.14} parent=0 // pred_check
    _
  $region3: #{bert_embedding_model_wrapper.14} parent=0 // pred_check_branch
    %12 = sbr.rel (0) target = $region5
  $region4: #{bert_embedding_model_wrapper.14} parent=0 // pred_region
    _
  $region5: #{bert_embedding_model_wrapper.14} parent=0 // pred_fallthru
    _
  // Predicated region
  $region6: #{bert_embedding_model_wrapper.14} parent=0 // pred_check
    _
  $region7: #{bert_embedding_model_wrapper.14} parent=0 // pred_check_branch
    %14 = sbr.rel (0) target = $region9
  $region8: #{bert_embedding_model_wrapper.14} parent=0 // pred_region
    _
  $region9: #{bert_embedding_model_wrapper.14} parent=0 // pred_fallthru
    _
  // Predicated region
  $region10: #{bert_embedding_model_wrapper.14} parent=0 // pred_check
    _
  $region11: #{bert_embedding_model_wrapper.14} parent=0 // pred_check_branch
    %16 = sbr.rel (0) target = $region13
  $region12: #{bert_embedding_model_wrapper.14} parent=0 // pred_region
    _
  $region13: #{bert_embedding_model_wrapper.14} parent=0 // pred_fallthru
    _
  // Predicated region
  $region14: #{bert_embedding_model_wrapper.14} parent=0 // pred_check
    _
  $region15: #{bert_embedding_model_wrapper.14} parent=0 // pred_check_branch
    %18 = sbr.rel (0) target = $region17
  $region16: #{bert_embedding_model_wrapper.14} parent=0 // pred_region
    _
  $region17: #{bert_embedding_model_wrapper.14} parent=0 // pred_fallthru
    _
  // Predicated region
  $region18: #{bert_embedding_model_wrapper.14} parent=0 // pred_check
    _
  $region19: #{bert_embedding_model_wrapper.14} parent=0 // pred_check_branch
    %20 = sbr.rel (0) target = $region21
  $region20: #{bert_embedding_model_wrapper.14} parent=0 // pred_region
    _
  $region21: #{bert_embedding_model_wrapper.14} parent=0 // pred_fallthru
    _
  // Predicated region
  $region22: #{bert_embedding_model_wrapper.14} parent=0 // pred_check
    _
  $region23: #{bert_embedding_model_wrapper.14} parent=0 // pred_check_branch
    %22 = sbr.rel (0) target = $region25
  $region24: #{bert_embedding_model_wrapper.14} parent=0 // pred_region
    _
  $region25: #{bert_embedding_model_wrapper.14} parent=0 // pred_fallthru
    _
  %p24 = scmp.eq.s32.totalorder 0, 0
  // Predicated region
  $region26: #{bert_embedding_model_wrapper.14} parent=0 // pred_check
    %p25 = pneg %p24
  $region27: #{bert_embedding_model_wrapper.14} parent=0 // pred_check_branch
    %27 = sbr.rel (%p25) target = $region29
  $region28: #{bert_embedding_model_wrapper.14} parent=0 // pred_region
    %vm28 = vcmask 261120
    %29 = vst.msk [vmem:[#allocation2] sm:$0xff] %vm28, 0.0
    %30 = vst.msk [vmem:[#allocation2 + $0x8] sm:$0xff] %vm28, 0.0
  $region29: #{bert_embedding_model_wrapper.14} parent=0 // pred_fallthru
    _
  %v31 = vld [vmem:[#allocation2] sm:$0xff]
  %v32 = vld [vmem:[#allocation2 + $0x8] sm:$0xff]
  %v33 = vld [vmem:[%s0] sm:$0xf]
  %v34 = vld [vmem:[%s0 + $0x4] sm:$0xf]
  %v35 = vld [vmem:[%s1] sm:$0xf]
  %v36 = vld [vmem:[%s1 + $0x4] sm:$0xf]
  %v37 = vld [vmem:[%s1 + $0x8] sm:$0xf]
  %v38 = vld [vmem:[%s1 + $0xc] sm:$0xf]
  %v39 = vld [vmem:[%s1 + $0x10] sm:$0xf]
  %v40 = vld [vmem:[%s1 + $0x14] sm:$0xf]
  %v41 = vld [vmem:[%s1 + $0x18] sm:$0xf]
  %v42 = vld [vmem:[%s1 + $0x1c] sm:$0xf]
  %v45 = vunpack.c.l.b16 %v33
  %v46 = vunpack.c.l.b16 %v34
  %v47 = vpack.c.b16 %v46, %v45
  %v56 = vunpack.c.l.b16 %v35
  %v57 = vunpack.c.l.b16 %v36
  %v58 = vunpack.c.l.b16 %v37
  %v59 = vunpack.c.l.b16 %v38
  %v60 = vunpack.c.l.b16 %v39
  %v61 = vunpack.c.l.b16 %v40
  %v62 = vunpack.c.l.b16 %v41
  %v63 = vunpack.c.l.b16 %v42
  %v64 = vpack.c.b16 %v57, %v56
  %v65 = vpack.c.b16 %v59, %v58
  %v66 = vpack.c.b16 %v61, %v60
  %v67 = vpack.c.b16 %v63, %v62
  %vm72 = vcmask 523264
  %v74 = vsel %vm72, %v47, 0
  %76 = vmatprep.subr.bf16.mxu0 0
  %77 = vmatpush1.bf16.msra.mxu0 %v64
  %78 = vmatprep.subr.bf16.mxu0 0
  %79 = vmatpush1.bf16.msra.mxu0 %v65
  %80 = vmatprep.subr.bf16.mxu0 0
  %81 = vmatpush1.bf16.msra.mxu0 %v66
  %82 = vmatprep.subr.bf16.mxu0 0
  %83 = vmatpush1.bf16.msra.mxu0 %v67
  %84 = vmatprep.subr.bf16.mxu0 0
  %85 = vmatpush1.bf16.msra.mxu0 0
  %86 = vmatprep.subr.bf16.mxu0 0
  %87 = vmatpush1.bf16.msra.mxu0 0
  %88 = vmatprep.subr.bf16.mxu0 0
  %89 = vmatpush1.bf16.msra.mxu0 0
  %90 = vmatprep.subr.bf16.mxu0 0
  %91 = vmatpush1.bf16.msra.mxu0 0
  %92 = vmatprep.subr.bf16.mxu0 0
  %93 = vmatpush1.bf16.msra.mxu0 0
  %94 = vmatprep.subr.bf16.mxu0 0
  %95 = vmatpush1.bf16.msra.mxu0 0
  %96 = vmatprep.subr.bf16.mxu0 0
  %97 = vmatpush1.bf16.msra.mxu0 0
  %98 = vmatprep.subr.bf16.mxu0 0
  %99 = vmatpush1.bf16.msra.mxu0 0
  %100 = vmatprep.subr.bf16.mxu0 0
  %101 = vmatpush1.bf16.msra.mxu0 0
  %102 = vmatprep.subr.bf16.mxu0 0
  %103 = vmatpush1.bf16.msra.mxu0 0
  %104 = vmatprep.subr.bf16.mxu0 0
  %105 = vmatpush1.bf16.msra.mxu0 0
  %106 = vmatprep.subr.bf16.mxu0 0
  %107 = vmatpush1.bf16.msra.mxu0 0
  %108 = vmatprep.mubr.bf16.mxu0 0
  %109 = vmatmul.mubr.bf16.gmra.mrb[0].mxu0 %v74
  %v110 = vpop.f32.mrb[0].mxu0
  %v111 = vadd.f32 0.0, %v110
  %v112 = vpop.f32.mrb[0].mxu0
  %v113 = vpop.f32.mrb[0].mxu0
  %v114 = vadd.f32 0.0, %v113
  %v115 = vpop.f32.mrb[0].mxu0
  %116 = vdwg.mxu0
  %v117 = vadd.f32 %v31, %v111
  %v118 = vadd.f32 %v32, %v114
  %vm119 = vcmask 261120
  %120 = vst.msk [vmem:[#allocation2] sm:$0xff] %vm119, %v117
  %121 = vst.msk [vmem:[#allocation2 + $0x8] sm:$0xff] %vm119, %v118
  // Predicated region
  $region30: #{bert_embedding_model_wrapper.14} parent=0 // pred_check
    %p122 = pneg %p24
  $region31: #{bert_embedding_model_wrapper.14} parent=0 // pred_check_branch
    %124 = sbr.rel (%p122) target = $region33
  $region32: #{bert_embedding_model_wrapper.14} parent=0 // pred_region
    %v125 = vld [vmem:[#allocation2] sm:$0xff]
    %v126 = vld [vmem:[#allocation2 + $0x8] sm:$0xff]
    %v127 = vld [vmem:[%s2] sm:$0x1]
    %v129 = vlaneseq
    %v130 = vshrl.u32 %v129, 7
    %v131 = vsub.s32 0, %v130
    %v132 = vrot.slane %v127, %v131
    %v134 = vadd.f32 %v125, %v132
    %v135 = vadd.f32 %v126, %v132
    %v136 = vld [vmem:[%s3] sm:$0xf]
    %v137 = vld [vmem:[%s3 + $0x4] sm:$0xf]
    %v138 = vunpack.c.l.bf16 %v136
    %v139 = vunpack.c.l.bf16 %v137
    %v140 = vadd.f32 %v134, %v138
    %v141 = vadd.f32 %v135, %v139
    %v142 = vsel %vm119, %v140, 0.0
    %143 = vadd.xlane.f32.xlu0 %v142
    %v144 = vpop.xlane.xlu0 %143
    %v145 = vsel %vm119, %v141, 0.0
    %146 = vadd.xlane.f32.xlu0 %v145
    %v147 = vpop.xlane.xlu0 %146
    %v148 = vrcp.pop 32.0
    %v149 = vmul.f32 %v144, %v148
    %v150 = vmul.f32 %v147, %v148
    %v151 = vsub.f32 %v140, %v149
    %v152 = vsub.f32 %v141, %v150
    %v153 = vmul.f32 %v151, %v151
    %v154 = vmul.f32 %v152, %v152
    %v155 = vsel %vm119, %v153, 0.0
    %156 = vadd.xlane.f32.xlu0 %v155
    %v157 = vpop.xlane.xlu0 %156
    %v158 = vsel %vm119, %v154, 0.0
    %159 = vadd.xlane.f32.xlu0 %v158
    %v160 = vpop.xlane.xlu0 %159
    %v161 = vmul.f32 %v157, %v148
    %v162 = vmul.f32 %v160, %v148
    %v163 = vadd.f32 %v161, 1e-12
    %v164 = vadd.f32 %v162, 1e-12
    %v165 = vrsqrt.pop %v163
    %v166 = vrsqrt.pop %v164
    %v167 = vmul.f32 %v151, %v165
    %v168 = vmul.f32 %v152, %v166
    %v169 = vld [vmem:[%s4] sm:$0x1]
    %v171 = vlaneseq
    %v172 = vshrl.u32 %v171, 7
    %v173 = vsub.s32 0, %v172
    %v174 = vrot.slane %v169, %v173
    %v176 = vmul.f32 %v167, %v174
    %v177 = vmul.f32 %v168, %v174
    %v178 = vld [vmem:[%s5] sm:$0x1]
    %v180 = vlaneseq
    %v181 = vshrl.u32 %v180, 7
    %v182 = vsub.s32 0, %v181
    %v183 = vrot.slane %v178, %v182
    %v185 = vadd.f32 %v176, %v183
    %v186 = vadd.f32 %v177, %v183
    %v187 = vpack.c.bf16 %v186, %v185
    %v189 = vunpack.c.l.b16 %v187
    %v190 = vunpack.c.h.b16 %v187
    %v191 = vpack.c.b16 %v189, %v189
    %v192 = vpack.c.b16 %v190, %v190
    %vm195 = vcmask 257024
    %196 = vst.msk [vmem:[%s6] sm:$0xf] %vm195, %v191
    %197 = vst.msk [vmem:[%s6 + $0x4] sm:$0xf] %vm195, %v192
  $region33: #{bert_embedding_model_wrapper.14} parent=0 // pred_fallthru
    _
  // Predicated region
  $region34: #{bert_embedding_model_wrapper.14} parent=0 // pred_check
    _
  $region35: #{bert_embedding_model_wrapper.14} parent=0 // pred_check_branch
    %199 = sbr.rel (0) target = $region37
  $region36: #{bert_embedding_model_wrapper.14} parent=0 // pred_region
    _
  $region37: #{bert_embedding_model_wrapper.14} parent=0 // pred_fallthru
    _
  // Predicated region
  $region38: #{bert_embedding_model_wrapper.14} parent=0 // pred_check
    _
  $region39: #{bert_embedding_model_wrapper.14} parent=0 // pred_check_branch
    %201 = sbr.rel (0) target = $region41
  $region40: #{bert_embedding_model_wrapper.14} parent=0 // pred_region
    _
  $region41: #{bert_embedding_model_wrapper.14} parent=0 // pred_fallthru
    _

</llo_original>
